<compile_context>
chip_gen: v7x
topology: tpu7x:2x2x1
jax: 0.10.0
libtpu: 0.0.40
codegen_flags: <defaults>
</compile_context>

<pallas_src>
import jax
import jax.numpy as jnp
import numpy as np
from jax import lax
from jax.experimental import pallas as pl
from jax.experimental.pallas import tpu as pltpu


# ----------------------------------------------------------------------------- helpers
def _round_up(x, m):
    return (x + m - 1) // m * m


def _padded_bytes(shape, dtype):
    """Rough VMEM footprint of a buffer: pad the two minor dims to (8, 128)."""
    s = list(shape)
    if len(s) >= 1:
        s[-1] = _round_up(int(s[-1]), 128)
    if len(s) >= 2:
        s[-2] = _round_up(int(s[-2]), 8)
    n = 1
    for d in s:
        n *= int(d)
    return n * jnp.dtype(dtype).itemsize


def _vmem_limit(block_list):
    """block_list: [(num_buffers, shape, dtype), ...] -> scoped-VMEM limit in bytes."""
    need = sum(nbuf * _padded_bytes(shape, dt) for nbuf, shape, dt in block_list)
    cap = 64 << 20                      # assume the smallest (v7x) if the query fails
    try:
        cap = int(pltpu.get_tpu_info().vmem_capacity_bytes)
    except Exception:
        pass
    # `need` already counts per-spec double buffering; add headroom for Mosaic's internal
    # scratch and never exceed ~3/4 of physical VMEM (v7x only has 64 MiB).
    return int(min(max(need + (8 << 20), 32 << 20), cap * 3 // 4))


def _pick_tile_rows(H, W, Kp, itemsize, col_budget=2 << 20, max_rows=2048):
    """Largest divisor of H whose im2col tile (TH*W, 9*Cin) fits the scratch budget."""
    best = None
    for th in range(1, H + 1):
        if H % th:
            continue
        thw = th * W
        if th < H and thw % 8:
            continue                     # sublane rule for the tiled conv-slab block
        if thw * Kp * itemsize <= col_budget and thw <= max_rows:
            best = th
    # Fall back to the whole image (block == full array, always legal) rather than TH=1.
    return best if best is not None else H


def _weight_spec(shape, index_map):
    """Grid-invariant block: single-buffer it (double-buffering an invariant block wastes
    VMEM with zero pipelining benefit). Fall back silently if pipeline_mode is absent."""
    try:
        return pl.BlockSpec(shape, index_map, pipeline_mode=pl.Buffered(1))
    except Exception:
        return pl.BlockSpec(shape, index_map)


# ----------------------------------------------------------------------------- kernels
def _make_conv_kernel(TH, W, segments):
    """Pass 1: im2col + one MXU matmul per row tile; accumulate IN statistics."""

    def conv_kernel(xa_ref, xb1_ref, xb2_ref, w_ref, conv_ref, stats_ref, col_ref):
        # xa_ref   : (1, TH, W+2, Cin)  body rows of the padded input window
        # xb1_ref  : (1, 1,  W+2, Cin)  halo row TH of the window
        # xb2_ref  : (1, 1,  W+2, Cin)  halo row TH+1 of the window
        # w_ref    : (9*Cin, C_pad)     im2col-ordered, channel-padded weights
        # conv_ref : (1, TH*W, C_pad)   raw conv tile (lane-dense slab)
        # stats_ref: (1, 2, C_pad) f32  per-image running [sum; sum of squares]
        # col_ref  : (TH*W, 9*Cin)      VMEM scratch: im2col tile
        t = pl.program_id(1)

        # im2col: output row j of the tile needs padded-input window row j+dy.
        # Window rows [dy, TH) come from the body block, row TH from halo row 1,
        # row TH+1 from halo row 2 (all guards are static Python).
        for (tap, c0, c1, koff) in segments:
            dy, dx = tap // 3, tap % 3
            c = c1 - c0
            n_a = TH - dy
            if n_a > 0:
                col_ref[0:n_a * W, koff:koff + c] = (
                    xa_ref[0, dy:TH, dx:dx + W, c0:c1].reshape(n_a * W, c))
            if dy >= 1 and TH >= dy:
                j = TH - dy
                col_ref[j * W:(j + 1) * W, koff:koff + c] = (
                    xb1_ref[0, 0, dx:dx + W, c0:c1])
            if dy >= 2:
                j = TH + 1 - dy
                col_ref[j * W:(j + 1) * W, koff:koff + c] = (
                    xb2_ref[0, 0, dx:dx + W, c0:c1])

        # ONE MXU matmul with K = 9*Cin; accumulation is f32 regardless of operand dtype.
        y = jnp.dot(col_ref[...], w_ref[...], preferred_element_type=jnp.float32)
        conv_ref[0] = y.astype(conv_ref.dtype)

        # InstanceNorm statistics, resident in VMEM across the (arbitrary) tile axis.
        @pl.when(t == 0)
        def _():
            stats_ref[...] = jnp.zeros_like(stats_ref)

        stats_ref[0, 0:1, :] += jnp.sum(y, axis=0, keepdims=True)
        stats_ref[0, 1:2, :] += jnp.sum(y * y, axis=0, keepdims=True)

    return conv_kernel


def _make_norm_kernel(HW, Cout):
    """Pass 2: InstanceNorm(affine=False, eps=1e-5) + LeakyReLU(0.2) per tile."""
    inv_n = 1.0 / float(HW)

    def norm_kernel(conv_ref, stats_ref, o_ref):
        # conv_ref : (1, TH*W, C_pad)   raw conv tile
        # stats_ref: (1, 2, C_pad) f32  per-image [sum; sum of squares]
        # o_ref    : (1, TH*W, Cout)    final activation tile
        mean = stats_ref[0, 0:1, :] * inv_n                              # (1, C_pad)
        var = jnp.maximum(stats_ref[0, 1:2, :] * inv_n - mean * mean, 0.0)
        inv_std = lax.rsqrt(var + 1e-5)                                  # EUP slot
        y = (conv_ref[0].astype(jnp.float32) - mean) * inv_std
        y = jnp.where(y > 0.0, y, 0.2 * y)
        o_ref[0] = y[:, :Cout].astype(o_ref.dtype)
        # dropout = 0.0 -> identity.

    return norm_kernel


# ----------------------------------------------------------------------------- wrappers
def unet_down_nhwc(x_nhwc, w_hwio, *, tile_rows=None, matmul_dtype=None):
    """Core wrapper. x_nhwc: (N, H, W, Cin); w_hwio: (3, 3, Cin, Cout) -> (N, H, W, Cout)."""
    N, H, W, Cin = (int(d) for d in x_nhwc.shape)
    Cout = int(w_hwio.shape[-1])
    C_pad = _round_up(Cout, 128)            # lane-dense matmul output / conv slab
    mm_dtype = jnp.dtype(matmul_dtype) if matmul_dtype is not None else jnp.dtype(x_nhwc.dtype)
    conv_dtype = jnp.float32 if mm_dtype == jnp.dtype(jnp.float32) else mm_dtype
    isz = mm_dtype.itemsize

    # K = 9*Cin reordered as (cin_block_of_128, tap, cin) so per-tap im2col stores are
    # 128-lane aligned whenever Cin >= 128.  For Cin < 128 this is the plain (tap, cin)
    # order.  TODO(synk): tiny-Cin first layers (Cin=3/4) starve the MXU contraction; a
    # width-folded layout would be a better strategy there.
    segments, koff = [], 0
    for c0 in range(0, Cin, 128):
        c1 = min(Cin, c0 + 128)
        for tap in range(9):
            segments.append((tap, c0, c1, koff))
            koff += c1 - c0
    Kp = koff                               # == 9 * Cin

    perm = np.concatenate([np.arange(tap * Cin + c0, tap * Cin + c1)
                           for (tap, c0, c1, _) in segments])
    w2d = w_hwio.reshape(9 * Cin, Cout).astype(mm_dtype)
    if not np.array_equal(perm, np.arange(9 * Cin)):
        w2d = w2d[perm]
    if C_pad != Cout:
        w2d = jnp.pad(w2d, ((0, 0), (0, C_pad - Cout)))

    if (tile_rows is not None and H % int(tile_rows) == 0
            and (int(tile_rows) == H or (int(tile_rows) * W) % 8 == 0)):
        TH = int(tile_rows)
    else:
        TH = _pick_tile_rows(H, W, Kp, isz)
    T = H // TH
    THW = TH * W
    HW = H * W

    # Halo handled by padding the input once; the three Blocked views below (TH-row body
    # + two single halo rows) give each grid step its (TH+2)-row window without
    # overlapping block indices or manual DMA.
    x_pad = jnp.pad(x_nhwc.astype(mm_dtype), ((0, 0), (1, 1), (1, 1), (0, 0)))

    vmem1 = _vmem_limit([
        (2, (1, TH, W + 2, Cin), mm_dtype),       # body block, double-buffered
        (4, (1, 1, W + 2, Cin), mm_dtype),        # two halo-row blocks
        (2, (Kp, C_pad), mm_dtype),               # weights (x2 in case Buffered(1) is unavailable)
        (2, (1, THW, C_pad), conv_dtype),         # conv tile out
        (2, (1, 2, C_pad), jnp.float32),          # stats out
        (1, (THW, Kp), mm_dtype),                 # im2col scratch
    ])

    conv_out, stats = pl.pallas_call(
        _make_conv_kernel(TH, W, segments),
        out_shape=(jax.ShapeDtypeStruct((N, HW, C_pad), conv_dtype),
                   jax.ShapeDtypeStruct((N, 2, C_pad), jnp.float32)),
        grid_spec=pltpu.PrefetchScalarGridSpec(
            num_scalar_prefetch=0,
            grid=(N, T),
            in_specs=[
                pl.BlockSpec((1, TH, W + 2, Cin), lambda n, t: (n, t, 0, 0)),
                pl.BlockSpec((1, 1, W + 2, Cin), lambda n, t: (n, t * TH + TH, 0, 0)),
                pl.BlockSpec((1, 1, W + 2, Cin), lambda n, t: (n, t * TH + TH + 1, 0, 0)),
                _weight_spec((Kp, C_pad), lambda n, t: (0, 0)),
            ],
            out_specs=[
                pl.BlockSpec((1, THW, C_pad), lambda n, t: (n, t, 0)),
                pl.BlockSpec((1, 2, C_pad), lambda n, t: (n, 0, 0)),
            ],
            scratch_shapes=[pltpu.VMEM((THW, Kp), mm_dtype)],
        ),
        compiler_params=pltpu.CompilerParams(
            dimension_semantics=("parallel", "arbitrary"),
            vmem_limit_bytes=vmem1,
        ),
    )(x_pad, x_pad, x_pad, w2d)

    vmem2 = _vmem_limit([
        (2, (1, THW, C_pad), conv_dtype),
        (2, (1, 2, C_pad), jnp.float32),
        (2, (1, THW, Cout), x_nhwc.dtype),
    ])

    out = pl.pallas_call(
        _make_norm_kernel(HW, Cout),
        out_shape=jax.ShapeDtypeStruct((N, HW, Cout), x_nhwc.dtype),
        grid_spec=pltpu.PrefetchScalarGridSpec(
            num_scalar_prefetch=0,
            grid=(N, T),
            in_specs=[
                pl.BlockSpec((1, THW, C_pad), lambda n, t: (n, t, 0)),
                pl.BlockSpec((1, 2, C_pad), lambda n, t: (n, 0, 0)),
            ],
            out_specs=pl.BlockSpec((1, THW, Cout), lambda n, t: (n, t, 0)),
        ),
        compiler_params=pltpu.CompilerParams(
            dimension_semantics=("parallel", "parallel"),
            vmem_limit_bytes=vmem2,
        ),
    )(conv_out, stats)

    return out.reshape(N, H, W, Cout)


def unet_down(x_nchw, w_oihw, bias=None, *, tile_rows=None, matmul_dtype=None):
    """PyTorch-layout wrapper (NCHW in/out, OIHW weights).

    The conv bias is accepted for API parity but unused: InstanceNorm2d(affine=False)
    subtracts the per-channel mean right after the conv, cancelling it exactly.
    """
    del bias
    x_nhwc = jnp.transpose(x_nchw, (0, 2, 3, 1))
    w_hwio = jnp.transpose(w_oihw, (2, 3, 1, 0))
    y = unet_down_nhwc(x_nhwc, w_hwio, tile_rows=tile_rows, matmul_dtype=matmul_dtype)
    return jnp.transpose(y, (0, 3, 1, 2))


def unet_down_ref(x_nchw, w_oihw, bias):
    """Pure-JAX reference mirroring the PyTorch module (conv+bias -> IN -> LeakyReLU)."""
    x_nhwc = jnp.transpose(x_nchw, (0, 2, 3, 1))
    w_hwio = jnp.transpose(w_oihw, (2, 3, 1, 0))
    y = lax.conv_general_dilated(
        x_nhwc, w_hwio, window_strides=(1, 1), padding="SAME",
        dimension_numbers=("NHWC", "HWIO", "NHWC"))
    y = y + bias.reshape(1, 1, 1, -1)
    mean = jnp.mean(y, axis=(1, 2), keepdims=True)
    var = jnp.mean((y - mean) ** 2, axis=(1, 2), keepdims=True)
    y = (y - mean) * lax.rsqrt(var + 1e-5)
    y = jnp.where(y > 0, y, 0.2 * y)
    return jnp.transpose(y, (0, 3, 1, 2))


# ----------------------------------------------------------------------------- test
if __name__ == "__main__":
    key = jax.random.PRNGKey(0)

    def run_case(case_key, N, Cin, Cout, H, W, tile_rows=None, matmul_dtype=None,
                 rtol=2e-4, atol=2e-4):
        kx, kw, kb = jax.random.split(case_key, 3)
        x = jax.random.normal(kx, (N, Cin, H, W), dtype=jnp.float32)
        fan_in = Cin * 9
        bound = 1.0 / np.sqrt(fan_in)
        w_oihw = jax.random.uniform(kw, (Cout, Cin, 3, 3), jnp.float32, -bound, bound)
        bias = jax.random.uniform(kb, (Cout,), jnp.float32, -bound, bound)
        out = jax.block_until_ready(
            unet_down(x, w_oihw, bias, tile_rows=tile_rows, matmul_dtype=matmul_dtype))
        ref = jax.block_until_ready(unet_down_ref(x, w_oihw, bias))
        np.testing.assert_allclose(np.asarray(out), np.asarray(ref), rtol=rtol, atol=atol)

    k1, k2, k3 = jax.random.split(key, 3)
    # f32 path, 2 row tiles per image (exercises the halo views + stats accumulation).
    run_case(k1, N=2, Cin=4, Cout=8, H=16, W=16, tile_rows=8)
    # f32 path, N=1 with interior tiles and an odd (first-layer-like) channel count.
    run_case(k2, N=1, Cin=3, Cout=8, H=32, W=16, tile_rows=8)
    # bf16 MXU-operand path (accumulation / statistics stay f32); auto tile pick (T=1).
    # Looser tolerance because operands are rounded to bf16 while the reference is f32.
    run_case(k3, N=2, Cin=4, Cout=8, H=16, W=16, matmul_dtype=jnp.bfloat16,
             rtol=8e-2, atol=8e-2)
    print("KERNEL_OK")
</pallas_src>

<mosaic_0001>
module attributes {stable_mosaic.version = 11 : i64} {
  func.func @conv_kernel(%arg0: i32, %arg1: i32, %arg2: memref<1x8x18x4xf32, #tpu.memory_space<vmem>>, %arg3: memref<1x1x18x4xf32, #tpu.memory_space<vmem>>, %arg4: memref<1x1x18x4xf32, #tpu.memory_space<vmem>>, %arg5: memref<36x128xf32, #tpu.memory_space<vmem>>, %arg6: memref<1x128x128xf32, #tpu.memory_space<vmem>>, %arg7: memref<1x2x128xf32, #tpu.memory_space<vmem>>, %arg8: memref<128x36xf32, #tpu.memory_space<vmem>>) attributes {dimension_semantics = [#tpu.dimension_semantics<parallel>, #tpu.dimension_semantics<arbitrary>], iteration_bounds = array<i64: 2, 2>, scalar_prefetch = 0 : i64, scratch_operands = 1 : i64, tpu.core_type = #tpu.core_type<tc>, window_params = [{transform_indices = @transform_0, window_bounds = array<i64: 1, 8, 18, 4>}, {transform_indices = @transform_1, window_bounds = array<i64: 1, 1, 18, 4>}, {transform_indices = @transform_2, window_bounds = array<i64: 1, 1, 18, 4>}, {pipeline_mode = #tpu.pipeline_mode<synchronous>, transform_indices = @transform_3, window_bounds = array<i64: 36, 128>}, {transform_indices = @transform_4, window_bounds = array<i64: 1, 128, 128>}, {transform_indices = @transform_5, window_bounds = array<i64: 1, 2, 128>}]} {
    %c0 = arith.constant 0 : index
    %c0_0 = arith.constant 0 : index
    %c0_1 = arith.constant 0 : index
    %c0_2 = arith.constant 0 : index
    %0 = vector.load %arg2[%c0, %c0_0, %c0_1, %c0_2] : memref<1x8x18x4xf32, #tpu.memory_space<vmem>>, vector<1x8x16x4xf32>
    %1 = vector.shape_cast %0 : vector<1x8x16x4xf32> to vector<8x16x4xf32>
    %2 = vector.shape_cast %1 : vector<8x16x4xf32> to vector<128x4xf32>
    %c0_3 = arith.constant 0 : index
    %c0_4 = arith.constant 0 : index
    %3 = vector.load %arg8[%c0_3, %c0_4] : memref<128x36xf32, #tpu.memory_space<vmem>>, vector<128x4xf32>
    tpu.vector_store %arg8[%c0_3, %c0_4], %2 {strides = array<i32>} : memref<128x36xf32, #tpu.memory_space<vmem>>, vector<128x4xf32>,
    %c0_5 = arith.constant 0 : index
    %c0_6 = arith.constant 0 : index
    %c1 = arith.constant 1 : index
    %c0_7 = arith.constant 0 : index
    %4 = vector.load %arg2[%c0_5, %c0_6, %c1, %c0_7] : memref<1x8x18x4xf32, #tpu.memory_space<vmem>>, vector<1x8x16x4xf32>
    %5 = vector.shape_cast %4 : vector<1x8x16x4xf32> to vector<8x16x4xf32>
    %6 = vector.shape_cast %5 : vector<8x16x4xf32> to vector<128x4xf32>
    %c0_8 = arith.constant 0 : index
    %c4 = arith.constant 4 : index
    %7 = vector.load %arg8[%c0_8, %c4] : memref<128x36xf32, #tpu.memory_space<vmem>>, vector<128x4xf32>
    tpu.vector_store %arg8[%c0_8, %c4], %6 {strides = array<i32>} : memref<128x36xf32, #tpu.memory_space<vmem>>, vector<128x4xf32>,
    %c0_9 = arith.constant 0 : index
    %c0_10 = arith.constant 0 : index
    %c2 = arith.constant 2 : index
    %c0_11 = arith.constant 0 : index
    %8 = vector.load %arg2[%c0_9, %c0_10, %c2, %c0_11] : memref<1x8x18x4xf32, #tpu.memory_space<vmem>>, vector<1x8x16x4xf32>
    %9 = vector.shape_cast %8 : vector<1x8x16x4xf32> to vector<8x16x4xf32>
    %10 = vector.shape_cast %9 : vector<8x16x4xf32> to vector<128x4xf32>
    %c0_12 = arith.constant 0 : index
    %c8 = arith.constant 8 : index
    %11 = vector.load %arg8[%c0_12, %c8] : memref<128x36xf32, #tpu.memory_space<vmem>>, vector<128x4xf32>
    tpu.vector_store %arg8[%c0_12, %c8], %10 {strides = array<i32>} : memref<128x36xf32, #tpu.memory_space<vmem>>, vector<128x4xf32>,
    %c0_13 = arith.constant 0 : index
    %c1_14 = arith.constant 1 : index
    %c0_15 = arith.constant 0 : index
    %c0_16 = arith.constant 0 : index
    %12 = vector.load %arg2[%c0_13, %c1_14, %c0_15, %c0_16] : memref<1x8x18x4xf32, #tpu.memory_space<vmem>>, vector<1x7x16x4xf32>
    %13 = vector.shape_cast %12 : vector<1x7x16x4xf32> to vector<7x16x4xf32>
    %14 = vector.shape_cast %13 : vector<7x16x4xf32> to vector<112x4xf32>
    %c0_17 = arith.constant 0 : index
    %c12 = arith.constant 12 : index
    %15 = vector.load %arg8[%c0_17, %c12] : memref<128x36xf32, #tpu.memory_space<vmem>>, vector<112x4xf32>
    tpu.vector_store %arg8[%c0_17, %c12], %14 {strides = array<i32>} : memref<128x36xf32, #tpu.memory_space<vmem>>, vector<112x4xf32>,
    %c0_18 = arith.constant 0 : index
    %c0_19 = arith.constant 0 : index
    %c0_20 = arith.constant 0 : index
    %c0_21 = arith.constant 0 : index
    %16 = vector.load %arg3[%c0_18, %c0_19, %c0_20, %c0_21] : memref<1x1x18x4xf32, #tpu.memory_space<vmem>>, vector<1x1x16x4xf32>
    %17 = vector.shape_cast %16 : vector<1x1x16x4xf32> to vector<16x4xf32>
    %c112 = arith.constant 112 : index
    %c12_22 = arith.constant 12 : index
    %18 = vector.load %arg8[%c112, %c12_22] : memref<128x36xf32, #tpu.memory_space<vmem>>, vector<16x4xf32>
    tpu.vector_store %arg8[%c112, %c12_22], %17 {strides = array<i32>} : memref<128x36xf32, #tpu.memory_space<vmem>>, vector<16x4xf32>,
    %c0_23 = arith.constant 0 : index
    %c1_24 = arith.constant 1 : index
    %c1_25 = arith.constant 1 : index
    %c0_26 = arith.constant 0 : index
    %19 = vector.load %arg2[%c0_23, %c1_24, %c1_25, %c0_26] : memref<1x8x18x4xf32, #tpu.memory_space<vmem>>, vector<1x7x16x4xf32>
    %20 = vector.shape_cast %19 : vector<1x7x16x4xf32> to vector<7x16x4xf32>
    %21 = vector.shape_cast %20 : vector<7x16x4xf32> to vector<112x4xf32>
    %c0_27 = arith.constant 0 : index
    %c16 = arith.constant 16 : index
    %22 = vector.load %arg8[%c0_27, %c16] : memref<128x36xf32, #tpu.memory_space<vmem>>, vector<112x4xf32>
    tpu.vector_store %arg8[%c0_27, %c16], %21 {strides = array<i32>} : memref<128x36xf32, #tpu.memory_space<vmem>>, vector<112x4xf32>,
    %c0_28 = arith.constant 0 : index
    %c0_29 = arith.constant 0 : index
    %c1_30 = arith.constant 1 : index
    %c0_31 = arith.constant 0 : index
    %23 = vector.load %arg3[%c0_28, %c0_29, %c1_30, %c0_31] : memref<1x1x18x4xf32, #tpu.memory_space<vmem>>, vector<1x1x16x4xf32>
    %24 = vector.shape_cast %23 : vector<1x1x16x4xf32> to vector<16x4xf32>
    %c112_32 = arith.constant 112 : index
    %c16_33 = arith.constant 16 : index
    %25 = vector.load %arg8[%c112_32, %c16_33] : memref<128x36xf32, #tpu.memory_space<vmem>>, vector<16x4xf32>
    tpu.vector_store %arg8[%c112_32, %c16_33], %24 {strides = array<i32>} : memref<128x36xf32, #tpu.memory_space<vmem>>, vector<16x4xf32>,
    %c0_34 = arith.constant 0 : index
    %c1_35 = arith.constant 1 : index
    %c2_36 = arith.constant 2 : index
    %c0_37 = arith.constant 0 : index
    %26 = vector.load %arg2[%c0_34, %c1_35, %c2_36, %c0_37] : memref<1x8x18x4xf32, #tpu.memory_space<vmem>>, vector<1x7x16x4xf32>
    %27 = vector.shape_cast %26 : vector<1x7x16x4xf32> to vector<7x16x4xf32>
    %28 = vector.shape_cast %27 : vector<7x16x4xf32> to vector<112x4xf32>
    %c0_38 = arith.constant 0 : index
    %c20 = arith.constant 20 : index
    %29 = vector.load %arg8[%c0_38, %c20] : memref<128x36xf32, #tpu.memory_space<vmem>>, vector<112x4xf32>
    tpu.vector_store %arg8[%c0_38, %c20], %28 {strides = array<i32>} : memref<128x36xf32, #tpu.memory_space<vmem>>, vector<112x4xf32>,
    %c0_39 = arith.constant 0 : index
    %c0_40 = arith.constant 0 : index
    %c2_41 = arith.constant 2 : index
    %c0_42 = arith.constant 0 : index
    %30 = vector.load %arg3[%c0_39, %c0_40, %c2_41, %c0_42] : memref<1x1x18x4xf32, #tpu.memory_space<vmem>>, vector<1x1x16x4xf32>
    %31 = vector.shape_cast %30 : vector<1x1x16x4xf32> to vector<16x4xf32>
    %c112_43 = arith.constant 112 : index
    %c20_44 = arith.constant 20 : index
    %32 = vector.load %arg8[%c112_43, %c20_44] : memref<128x36xf32, #tpu.memory_space<vmem>>, vector<16x4xf32>
    tpu.vector_store %arg8[%c112_43, %c20_44], %31 {strides = array<i32>} : memref<128x36xf32, #tpu.memory_space<vmem>>, vector<16x4xf32>,
    %c0_45 = arith.constant 0 : index
    %c2_46 = arith.constant 2 : index
    %c0_47 = arith.constant 0 : index
    %c0_48 = arith.constant 0 : index
    %33 = vector.load %arg2[%c0_45, %c2_46, %c0_47, %c0_48] : memref<1x8x18x4xf32, #tpu.memory_space<vmem>>, vector<1x6x16x4xf32>
    %34 = vector.shape_cast %33 : vector<1x6x16x4xf32> to vector<6x16x4xf32>
    %35 = vector.shape_cast %34 : vector<6x16x4xf32> to vector<96x4xf32>
    %c0_49 = arith.constant 0 : index
    %c24 = arith.constant 24 : index
    %36 = vector.load %arg8[%c0_49, %c24] : memref<128x36xf32, #tpu.memory_space<vmem>>, vector<96x4xf32>
    tpu.vector_store %arg8[%c0_49, %c24], %35 {strides = array<i32>} : memref<128x36xf32, #tpu.memory_space<vmem>>, vector<96x4xf32>,
    %c0_50 = arith.constant 0 : index
    %c0_51 = arith.constant 0 : index
    %c0_52 = arith.constant 0 : index
    %c0_53 = arith.constant 0 : index
    %37 = vector.load %arg3[%c0_50, %c0_51, %c0_52, %c0_53] : memref<1x1x18x4xf32, #tpu.memory_space<vmem>>, vector<1x1x16x4xf32>
    %38 = vector.shape_cast %37 : vector<1x1x16x4xf32> to vector<16x4xf32>
    %c96 = arith.constant 96 : index
    %c24_54 = arith.constant 24 : index
    %39 = vector.load %arg8[%c96, %c24_54] : memref<128x36xf32, #tpu.memory_space<vmem>>, vector<16x4xf32>
    tpu.vector_store %arg8[%c96, %c24_54], %38 {strides = array<i32>} : memref<128x36xf32, #tpu.memory_space<vmem>>, vector<16x4xf32>,
    %c0_55 = arith.constant 0 : index
    %c0_56 = arith.constant 0 : index
    %c0_57 = arith.constant 0 : index
    %c0_58 = arith.constant 0 : index
    %40 = vector.load %arg4[%c0_55, %c0_56, %c0_57, %c0_58] : memref<1x1x18x4xf32, #tpu.memory_space<vmem>>, vector<1x1x16x4xf32>
    %41 = vector.shape_cast %40 : vector<1x1x16x4xf32> to vector<16x4xf32>
    %c112_59 = arith.constant 112 : index
    %c24_60 = arith.constant 24 : index
    %42 = vector.load %arg8[%c112_59, %c24_60] : memref<128x36xf32, #tpu.memory_space<vmem>>, vector<16x4xf32>
    tpu.vector_store %arg8[%c112_59, %c24_60], %41 {strides = array<i32>} : memref<128x36xf32, #tpu.memory_space<vmem>>, vector<16x4xf32>,
    %c0_61 = arith.constant 0 : index
    %c2_62 = arith.constant 2 : index
    %c1_63 = arith.constant 1 : index
    %c0_64 = arith.constant 0 : index
    %43 = vector.load %arg2[%c0_61, %c2_62, %c1_63, %c0_64] : memref<1x8x18x4xf32, #tpu.memory_space<vmem>>, vector<1x6x16x4xf32>
    %44 = vector.shape_cast %43 : vector<1x6x16x4xf32> to vector<6x16x4xf32>
    %45 = vector.shape_cast %44 : vector<6x16x4xf32> to vector<96x4xf32>
    %c0_65 = arith.constant 0 : index
    %c28 = arith.constant 28 : index
    %46 = vector.load %arg8[%c0_65, %c28] : memref<128x36xf32, #tpu.memory_space<vmem>>, vector<96x4xf32>
    tpu.vector_store %arg8[%c0_65, %c28], %45 {strides = array<i32>} : memref<128x36xf32, #tpu.memory_space<vmem>>, vector<96x4xf32>,
    %c0_66 = arith.constant 0 : index
    %c0_67 = arith.constant 0 : index
    %c1_68 = arith.constant 1 : index
    %c0_69 = arith.constant 0 : index
    %47 = vector.load %arg3[%c0_66, %c0_67, %c1_68, %c0_69] : memref<1x1x18x4xf32, #tpu.memory_space<vmem>>, vector<1x1x16x4xf32>
    %48 = vector.shape_cast %47 : vector<1x1x16x4xf32> to vector<16x4xf32>
    %c96_70 = arith.constant 96 : index
    %c28_71 = arith.constant 28 : index
    %49 = vector.load %arg8[%c96_70, %c28_71] : memref<128x36xf32, #tpu.memory_space<vmem>>, vector<16x4xf32>
    tpu.vector_store %arg8[%c96_70, %c28_71], %48 {strides = array<i32>} : memref<128x36xf32, #tpu.memory_space<vmem>>, vector<16x4xf32>,
    %c0_72 = arith.constant 0 : index
    %c0_73 = arith.constant 0 : index
    %c1_74 = arith.constant 1 : index
    %c0_75 = arith.constant 0 : index
    %50 = vector.load %arg4[%c0_72, %c0_73, %c1_74, %c0_75] : memref<1x1x18x4xf32, #tpu.memory_space<vmem>>, vector<1x1x16x4xf32>
    %51 = vector.shape_cast %50 : vector<1x1x16x4xf32> to vector<16x4xf32>
    %c112_76 = arith.constant 112 : index
    %c28_77 = arith.constant 28 : index
    %52 = vector.load %arg8[%c112_76, %c28_77] : memref<128x36xf32, #tpu.memory_space<vmem>>, vector<16x4xf32>
    tpu.vector_store %arg8[%c112_76, %c28_77], %51 {strides = array<i32>} : memref<128x36xf32, #tpu.memory_space<vmem>>, vector<16x4xf32>,
    %c0_78 = arith.constant 0 : index
    %c2_79 = arith.constant 2 : index
    %c2_80 = arith.constant 2 : index
    %c0_81 = arith.constant 0 : index
    %53 = vector.load %arg2[%c0_78, %c2_79, %c2_80, %c0_81] : memref<1x8x18x4xf32, #tpu.memory_space<vmem>>, vector<1x6x16x4xf32>
    %54 = vector.shape_cast %53 : vector<1x6x16x4xf32> to vector<6x16x4xf32>
    %55 = vector.shape_cast %54 : vector<6x16x4xf32> to vector<96x4xf32>
    %c0_82 = arith.constant 0 : index
    %c32 = arith.constant 32 : index
    %56 = vector.load %arg8[%c0_82, %c32] : memref<128x36xf32, #tpu.memory_space<vmem>>, vector<96x4xf32>
    tpu.vector_store %arg8[%c0_82, %c32], %55 {strides = array<i32>} : memref<128x36xf32, #tpu.memory_space<vmem>>, vector<96x4xf32>,
    %c0_83 = arith.constant 0 : index
    %c0_84 = arith.constant 0 : index
    %c2_85 = arith.constant 2 : index
    %c0_86 = arith.constant 0 : index
    %57 = vector.load %arg3[%c0_83, %c0_84, %c2_85, %c0_86] : memref<1x1x18x4xf32, #tpu.memory_space<vmem>>, vector<1x1x16x4xf32>
    %58 = vector.shape_cast %57 : vector<1x1x16x4xf32> to vector<16x4xf32>
    %c96_87 = arith.constant 96 : index
    %c32_88 = arith.constant 32 : index
    %59 = vector.load %arg8[%c96_87, %c32_88] : memref<128x36xf32, #tpu.memory_space<vmem>>, vector<16x4xf32>
    tpu.vector_store %arg8[%c96_87, %c32_88], %58 {strides = array<i32>} : memref<128x36xf32, #tpu.memory_space<vmem>>, vector<16x4xf32>,
    %c0_89 = arith.constant 0 : index
    %c0_90 = arith.constant 0 : index
    %c2_91 = arith.constant 2 : index
    %c0_92 = arith.constant 0 : index
    %60 = vector.load %arg4[%c0_89, %c0_90, %c2_91, %c0_92] : memref<1x1x18x4xf32, #tpu.memory_space<vmem>>, vector<1x1x16x4xf32>
    %61 = vector.shape_cast %60 : vector<1x1x16x4xf32> to vector<16x4xf32>
    %c112_93 = arith.constant 112 : index
    %c32_94 = arith.constant 32 : index
    %62 = vector.load %arg8[%c112_93, %c32_94] : memref<128x36xf32, #tpu.memory_space<vmem>>, vector<16x4xf32>
    tpu.vector_store %arg8[%c112_93, %c32_94], %61 {strides = array<i32>} : memref<128x36xf32, #tpu.memory_space<vmem>>, vector<16x4xf32>,
    %c0_95 = arith.constant 0 : index
    %c0_96 = arith.constant 0 : index
    %63 = vector.load %arg8[%c0_95, %c0_96] : memref<128x36xf32, #tpu.memory_space<vmem>>, vector<128x36xf32>
    %c0_97 = arith.constant 0 : index
    %c0_98 = arith.constant 0 : index
    %64 = vector.load %arg5[%c0_97, %c0_98] : memref<36x128xf32, #tpu.memory_space<vmem>>, vector<36x128xf32>
    %cst = arith.constant dense<0.000000e+00> : vector<128x128xf32>
    %65 = tpu.matmul %63, %64, %cst {dimension_numbers = #tpu.dot_dimension_numbers<[1], [0], [0], [1], [0, 0, 1, 1], [], []>} : vector<128x36xf32>, vector<36x128xf32>, vector<128x128xf32> -> vector<128x128xf32>
    %c0_99 = arith.constant 0 : index
    %c0_100 = arith.constant 0 : index
    %c0_101 = arith.constant 0 : index
    %66 = vector.load %arg6[%c0_99, %c0_100, %c0_101] : memref<1x128x128xf32, #tpu.memory_space<vmem>>, vector<1x128x128xf32>
    %67 = vector.shape_cast %66 : vector<1x128x128xf32> to vector<128x128xf32>
    %68 = vector.shape_cast %65 : vector<128x128xf32> to vector<1x128x128xf32>
    tpu.vector_store %arg6[%c0_99, %c0_100, %c0_101], %68 {strides = array<i32>} : memref<1x128x128xf32, #tpu.memory_space<vmem>>, vector<1x128x128xf32>,
    %c0_i32 = arith.constant 0 : i32
    %69 = arith.cmpi eq, %arg1, %c0_i32 : i32
    %70 = arith.extui %69 : i1 to i32
    %c0_i32_102 = arith.constant 0 : i32
    %71 = arith.cmpi ne, %70, %c0_i32_102 : i32
    scf.if %71 {
      %cst_117 = arith.constant 0.000000e+00 : f32
      %89 = vector.broadcast %cst_117 : f32 to vector<1x2x128xf32>
      %c0_118 = arith.constant 0 : index
      %c0_119 = arith.constant 0 : index
      %c0_120 = arith.constant 0 : index
      %90 = vector.load %arg7[%c0_118, %c0_119, %c0_120] : memref<1x2x128xf32, #tpu.memory_space<vmem>>, vector<1x2x128xf32>
      tpu.vector_store %arg7[%c0_118, %c0_119, %c0_120], %89 {strides = array<i32>} : memref<1x2x128xf32, #tpu.memory_space<vmem>>, vector<1x2x128xf32>,
    } else {
    }
    %c0_103 = arith.constant 0 : index
    %c0_104 = arith.constant 0 : index
    %c0_105 = arith.constant 0 : index
    %72 = vector.load %arg7[%c0_103, %c0_104, %c0_105] : memref<1x2x128xf32, #tpu.memory_space<vmem>>, vector<1x1x128xf32>
    %73 = vector.shape_cast %72 : vector<1x1x128xf32> to vector<1x128xf32>
    %cst_106 = arith.constant dense<0.000000e+00> : vector<128xf32>
    %74 = vector.multi_reduction <add>, %65, %cst_106 [0] : vector<128x128xf32> to vector<128xf32>
    %75 = vector.shape_cast %74 : vector<128xf32> to vector<1x128xf32>
    %76 = arith.addf %73, %75 : vector<1x128xf32>
    %c0_107 = arith.constant 0 : index
    %c0_108 = arith.constant 0 : index
    %c0_109 = arith.constant 0 : index
    %77 = vector.load %arg7[%c0_107, %c0_108, %c0_109] : memref<1x2x128xf32, #tpu.memory_space<vmem>>, vector<1x1x128xf32>
    %78 = vector.shape_cast %77 : vector<1x1x128xf32> to vector<1x128xf32>
    %79 = vector.shape_cast %76 : vector<1x128xf32> to vector<1x1x128xf32>
    tpu.vector_store %arg7[%c0_107, %c0_108, %c0_109], %79 {strides = array<i32>} : memref<1x2x128xf32, #tpu.memory_space<vmem>>, vector<1x1x128xf32>,
    %c0_110 = arith.constant 0 : index
    %c1_111 = arith.constant 1 : index
    %c0_112 = arith.constant 0 : index
    %80 = vector.load %arg7[%c0_110, %c1_111, %c0_112] : memref<1x2x128xf32, #tpu.memory_space<vmem>>, vector<1x1x128xf32>
    %81 = vector.shape_cast %80 : vector<1x1x128xf32> to vector<1x128xf32>
    %82 = arith.mulf %65, %65 : vector<128x128xf32>
    %cst_113 = arith.constant dense<0.000000e+00> : vector<128xf32>
    %83 = vector.multi_reduction <add>, %82, %cst_113 [0] : vector<128x128xf32> to vector<128xf32>
    %84 = vector.shape_cast %83 : vector<128xf32> to vector<1x128xf32>
    %85 = arith.addf %81, %84 : vector<1x128xf32>
    %c0_114 = arith.constant 0 : index
    %c1_115 = arith.constant 1 : index
    %c0_116 = arith.constant 0 : index
    %86 = vector.load %arg7[%c0_114, %c1_115, %c0_116] : memref<1x2x128xf32, #tpu.memory_space<vmem>>, vector<1x1x128xf32>
    %87 = vector.shape_cast %86 : vector<1x1x128xf32> to vector<1x128xf32>
    %88 = vector.shape_cast %85 : vector<1x128xf32> to vector<1x1x128xf32>
    tpu.vector_store %arg7[%c0_114, %c1_115, %c0_116], %88 {strides = array<i32>} : memref<1x2x128xf32, #tpu.memory_space<vmem>>, vector<1x1x128xf32>,
    return
  }
  func.func @transform_0(%arg0: i32, %arg1: i32) -> (i32, i32, i32, i32) {
    %c0_i32 = arith.constant 0 : i32
    %c0_i32_0 = arith.constant 0 : i32
    %c0_i32_1 = arith.constant 0 : i32
    return %arg0, %arg1, %c0_i32, %c0_i32_0 : i32, i32, i32, i32
  }
  func.func @transform_1(%arg0: i32, %arg1: i32) -> (i32, i32, i32, i32) {
    %c8_i32 = arith.constant 8 : i32
    %0 = arith.muli %arg1, %c8_i32 : i32
    %c8_i32_0 = arith.constant 8 : i32
    %1 = arith.addi %0, %c8_i32_0 : i32
    %c0_i32 = arith.constant 0 : i32
    %c0_i32_1 = arith.constant 0 : i32
    %c0_i32_2 = arith.constant 0 : i32
    return %arg0, %1, %c0_i32, %c0_i32_1 : i32, i32, i32, i32
  }
  func.func @transform_2(%arg0: i32, %arg1: i32) -> (i32, i32, i32, i32) {
    %c8_i32 = arith.constant 8 : i32
    %0 = arith.muli %arg1, %c8_i32 : i32
    %c8_i32_0 = arith.constant 8 : i32
    %1 = arith.addi %0, %c8_i32_0 : i32
    %c1_i32 = arith.constant 1 : i32
    %2 = arith.addi %1, %c1_i32 : i32
    %c0_i32 = arith.constant 0 : i32
    %c0_i32_1 = arith.constant 0 : i32
    %c0_i32_2 = arith.constant 0 : i32
    return %arg0, %2, %c0_i32, %c0_i32_1 : i32, i32, i32, i32
  }
  func.func @transform_3(%arg0: i32, %arg1: i32) -> (i32, i32) {
    %c0_i32 = arith.constant 0 : i32
    %c0_i32_0 = arith.constant 0 : i32
    %c0_i32_1 = arith.constant 0 : i32
    return %c0_i32, %c0_i32_0 : i32, i32
  }
  func.func @transform_4(%arg0: i32, %arg1: i32) -> (i32, i32, i32) {
    %c0_i32 = arith.constant 0 : i32
    %c0_i32_0 = arith.constant 0 : i32
    return %arg0, %arg1, %c0_i32 : i32, i32, i32
  }
  func.func @transform_5(%arg0: i32, %arg1: i32) -> (i32, i32, i32) {
    %c0_i32 = arith.constant 0 : i32
    %c0_i32_0 = arith.constant 0 : i32
    %c0_i32_1 = arith.constant 0 : i32
    return %arg0, %c0_i32, %c0_i32_0 : i32, i32, i32
  }
}

</mosaic_0001>

<llo_original>
// kernel: tpu_custom_call.1
$region0: #{tpu_custom_call.1}
  #allocation0 [shape = 'u32[]', space=smem, size = 0x4, offset = 0x4, fixed_abs, tag = 'smem constant byte address 0x4 - core index']
  #allocation1 [shape = 'u32[144,128]{1,0:T(1,128)}', space=vmem, size = 0x12000, scoped, tag = 'internal scratch']
  #allocation2 [shape = 'f32[128,36]{1,0:T(8,128)}', space=vmem, size = 0x10000, scoped, tag = 'scratch operand']
  %s0 = inlined_call_operand.vmem [shape: f32[2,18,18,4], index: 0, kind: input, shape index: {}]
  %s1 = inlined_call_operand.vmem [shape: f32[2,18,18,4], index: 1, kind: input, shape index: {}]
  %s2 = inlined_call_operand.vmem [shape: f32[2,18,18,4], index: 2, kind: input, shape index: {}]
  %s3 = inlined_call_operand.vmem [shape: f32[36,128], index: 3, kind: input, shape index: {}]
  %s4 = inlined_call_operand.hbm [shape: f32[2,256,128], index: 4, kind: output, shape index: {0}]
  %s5 = inlined_call_operand.hbm [shape: f32[2,2,128], index: 5, kind: output, shape index: {1}]
  %6 = xla_tuple %s4, %s5
  %s7 = sld [smem:[#allocation0]]
  $region61: #{tpu_custom_call.1} parent=0
    _
  %s9 = ssub.s32 1, %s7
  %s10 = scalar_select 0, %s9, %s7
  $region1: #{tpu_custom_call.1} parent=0
    #allocation3 [shape = 'u8[131072]{0}', space=vmem, size = 0x20000, scoped, tag = 'output window, operand 0']
    #allocation4 [shape = 's32[2]{0}', space=sflag, size = 0x8, scoped, tag = 'scoped memory for tpu_custom_call.1']
    #allocation5 [shape = 'u8[2048]{0}', space=vmem, size = 0x800, scoped, tag = 'output window, operand 1']
    #allocation6 [shape = 's32[2]{0}', space=sflag, size = 0x8, scoped, tag = 'scoped memory for tpu_custom_call.1']
    %11 = vsyncpa [#allocation4], 0
    %s12 = scalar_lea.sflag [#allocation4], 1
    %13 = vsyncpa %s12, 0
    %14 = vsyncpa [#allocation6], 0
    %s15 = scalar_lea.sflag [#allocation6], 1
    %16 = vsyncpa %s15, 0
    loop: start=0, step=1, limit=6
    $region2: #{tpu_custom_call.1} parent=1 // loop_pre_header
      _
    $region3: #{tpu_custom_call.1} parent=1 // loop_header
      %s18 = sphi 0, %s22
      %p19 = scmp.ge.s32.totalorder %s18, 6
      %s25 = sphi 0, %s37
      %s26 = sphi 0, %s33
      %s27 = sphi 0, %s25
      %s28 = sphi 0, %s26
      %s29 = sphi 0, %s27
      %s30 = sphi 0, %s28
      %s42 = sphi 0, %s44
      %s45 = sphi 0, %s42
      %s46 = sphi 0, %s45
      %s62 = sphi 0, %s46
      %s74 = sphi 0, %s76
      %s77 = sphi 0, %s74
      %s78 = sphi 0, %s77
      %s94 = sphi 0, %s78
      %s106 = sphi 0, %s108
      %s109 = sphi 0, %s106
      %s110 = sphi 0, %s109
      %s126 = sphi 0, %s110
      %s130 = sphi 0, %s130
      %s132 = sphi 0, %s130
      %s133 = sphi 0, %s132
      %s147 = sphi 0, %s133
      %s155 = sphi 0, %s157
      %s158 = sphi 0, %s155
      %s159 = sphi 0, %s158
      %s175 = sphi 0, %s159
      %s181 = sphi 0, %s183
      %s184 = sphi 0, %s181
      %s185 = sphi 0, %s184
      %s201 = sphi 0, %s185
    $region4: #{tpu_custom_call.1} parent=1 // loop_header_branch
      %21 = sbr.rel (%p19) target = $region8
    $region5: #{tpu_custom_call.1} parent=1 // loop_body
      %s23 = ssub.s32 %s18, 1
      %s24 = ssub.s32 %s18, 2
      %s31 = sadd.s32 1, %s26
      %p32 = scmp.ge.s32.totalorder %s31, 2
      %s33 = scalar_select %p32, 0, %s31
      %s34 = sadd.s32 1, %s25
      %s35 = scalar_select %p32, %s34, %s25
      %p36 = scmp.ge.s32.totalorder %s35, 2
      %s37 = scalar_select %p36, 0, %s35
      %s38 = ssub.s32 %s25, %s37
      %s39 = ssub.s32 %s26, %s33
      %s40 = sor.u32 %s38, %s39
      %p41 = scmp.eq.s32.totalorder %s40, 0
      %s43 = sadd.s32 %s42, 1
      %s44 = scalar_select %p41, %s42, %s43
      %p47 = pneg %p41
      %p48 = scmp.eq.s32.totalorder %s18, 3
      %p49 = por %p47, %p48
      %p50 = scmp.ne.s32.totalorder %s42, %s45
      %p51 = scmp.eq.s32.totalorder %s18, 0
      %p52 = por %p50, %p51
      %p53 = scmp.ne.s32.totalorder %s42, %s45
      %p54 = scmp.eq.s32.totalorder %s23, 3
      %p55 = por %p53, %p54
      %p56 = scmp.ne.s32.totalorder %s45, %s46
      %p57 = scmp.eq.s32.totalorder %s23, 0
      %p58 = por %p56, %p57
      %p59 = scmp.ne.s32.totalorder %s45, %s46
      %p60 = scmp.eq.s32.totalorder %s24, 3
      %p61 = por %p59, %p60
      %p63 = scmp.ne.s32.totalorder %s46, %s62
      %p64 = scmp.eq.s32.totalorder %s24, 0
      %p65 = por %p63, %p64
      %s66 = smul.u32 %s26, 8
      %s67 = sadd.s32 %s66, 8
      %s68 = smul.u32 %s33, 8
      %s69 = sadd.s32 %s68, 8
      %s70 = ssub.s32 %s25, %s37
      %s71 = ssub.s32 %s67, %s69
      %s72 = sor.u32 %s70, %s71
      %p73 = scmp.eq.s32.totalorder %s72, 0
      %s75 = sadd.s32 %s74, 1
      %s76 = scalar_select %p73, %s74, %s75
      %p79 = pneg %p73
      %p80 = scmp.eq.s32.totalorder %s18, 3
      %p81 = por %p79, %p80
      %p82 = scmp.ne.s32.totalorder %s74, %s77
      %p83 = scmp.eq.s32.totalorder %s18, 0
      %p84 = por %p82, %p83
      %p85 = scmp.ne.s32.totalorder %s74, %s77
      %p86 = scmp.eq.s32.totalorder %s23, 3
      %p87 = por %p85, %p86
      %p88 = scmp.ne.s32.totalorder %s77, %s78
      %p89 = scmp.eq.s32.totalorder %s23, 0
      %p90 = por %p88, %p89
      %p91 = scmp.ne.s32.totalorder %s77, %s78
      %p92 = scmp.eq.s32.totalorder %s24, 3
      %p93 = por %p91, %p92
      %p95 = scmp.ne.s32.totalorder %s78, %s94
      %p96 = scmp.eq.s32.totalorder %s24, 0
      %p97 = por %p95, %p96
      %s98 = smul.u32 %s26, 8
      %s99 = sadd.s32 %s98, 9
      %s100 = smul.u32 %s33, 8
      %s101 = sadd.s32 %s100, 9
      %s102 = ssub.s32 %s25, %s37
      %s103 = ssub.s32 %s99, %s101
      %s104 = sor.u32 %s102, %s103
      %p105 = scmp.eq.s32.totalorder %s104, 0
      %s107 = sadd.s32 %s106, 1
      %s108 = scalar_select %p105, %s106, %s107
      %p111 = pneg %p105
      %p112 = scmp.eq.s32.totalorder %s18, 3
      %p113 = por %p111, %p112
      %p114 = scmp.ne.s32.totalorder %s106, %s109
      %p115 = scmp.eq.s32.totalorder %s18, 0
      %p116 = por %p114, %p115
      %p117 = scmp.ne.s32.totalorder %s106, %s109
      %p118 = scmp.eq.s32.totalorder %s23, 3
      %p119 = por %p117, %p118
      %p120 = scmp.ne.s32.totalorder %s109, %s110
      %p121 = scmp.eq.s32.totalorder %s23, 0
      %p122 = por %p120, %p121
      %p123 = scmp.ne.s32.totalorder %s109, %s110
      %p124 = scmp.eq.s32.totalorder %s24, 3
      %p125 = por %p123, %p124
      %p127 = scmp.ne.s32.totalorder %s110, %s126
      %p128 = scmp.eq.s32.totalorder %s24, 0
      %p129 = por %p127, %p128
      %s131 = sadd.s32 %s130, 1
      %p134 = scmp.eq.s32.totalorder %s18, 3
      %p135 = scmp.ne.s32.totalorder %s130, %s132
      %p136 = scmp.eq.s32.totalorder %s18, 0
      %p137 = por %p135, %p136
      %p138 = scmp.ne.s32.totalorder %s130, %s132
      %p139 = scmp.eq.s32.totalorder %s23, 3
      %p140 = por %p138, %p139
      %p141 = scmp.ne.s32.totalorder %s132, %s133
      %p142 = scmp.eq.s32.totalorder %s23, 0
      %p143 = por %p141, %p142
      %p144 = scmp.ne.s32.totalorder %s132, %s133
      %p145 = scmp.eq.s32.totalorder %s24, 3
      %p146 = por %p144, %p145
      %p148 = scmp.ne.s32.totalorder %s133, %s147
      %p149 = scmp.eq.s32.totalorder %s24, 0
      %p150 = por %p148, %p149
      %s151 = ssub.s32 %s25, %s37
      %s152 = ssub.s32 %s26, %s33
      %s153 = sor.u32 %s151, %s152
      %p154 = scmp.eq.s32.totalorder %s153, 0
      %s156 = sadd.s32 %s155, 1
      %s157 = scalar_select %p154, %s155, %s156
      %p160 = pneg %p154
      %p161 = scmp.eq.s32.totalorder %s18, 3
      %p162 = por %p160, %p161
      %p163 = scmp.ne.s32.totalorder %s155, %s158
      %p164 = scmp.eq.s32.totalorder %s18, 0
      %p165 = por %p163, %p164
      %p166 = scmp.ne.s32.totalorder %s155, %s158
      %p167 = scmp.eq.s32.totalorder %s23, 3
      %p168 = por %p166, %p167
      %p169 = scmp.ne.s32.totalorder %s158, %s159
      %p170 = scmp.eq.s32.totalorder %s23, 0
      %p171 = por %p169, %p170
      %p172 = scmp.ne.s32.totalorder %s158, %s159
      %p173 = scmp.eq.s32.totalorder %s24, 3
      %p174 = por %p172, %p173
      %p176 = scmp.ne.s32.totalorder %s159, %s175
      %p177 = scmp.eq.s32.totalorder %s24, 0
      %p178 = por %p176, %p177
      %s179 = ssub.s32 %s25, %s37
      %p180 = scmp.eq.s32.totalorder %s179, 0
      %s182 = sadd.s32 %s181, 1
      %s183 = scalar_select %p180, %s181, %s182
      %p186 = pneg %p180
      %p187 = scmp.eq.s32.totalorder %s18, 3
      %p188 = por %p186, %p187
      %p189 = scmp.ne.s32.totalorder %s181, %s184
      %p190 = scmp.eq.s32.totalorder %s18, 0
      %p191 = por %p189, %p190
      %p192 = scmp.ne.s32.totalorder %s181, %s184
      %p193 = scmp.eq.s32.totalorder %s23, 3
      %p194 = por %p192, %p193
      %p195 = scmp.ne.s32.totalorder %s184, %s185
      %p196 = scmp.eq.s32.totalorder %s23, 0
      %p197 = por %p195, %p196
      %p198 = scmp.ne.s32.totalorder %s184, %s185
      %p199 = scmp.eq.s32.totalorder %s24, 3
      %p200 = por %p198, %p199
      %p202 = scmp.ne.s32.totalorder %s185, %s201
      %p203 = scmp.eq.s32.totalorder %s24, 0
      %p204 = por %p202, %p203
      %p205 = scmp.le.s32.totalorder 1, %s18
      %p206 = scmp.lt.s32.totalorder %s18, 5
      %p207 = pnand %p205, %p206
      %p208 = pneg %p207
      // Predicated region
      $region9: #{tpu_custom_call.1} parent=5 // pred_check
        _
      $region10: #{tpu_custom_call.1} parent=5 // pred_check_branch
        %210 = sbr.rel (%p207) target = $region12
      $region11: #{tpu_custom_call.1} parent=5 // pred_region
        %s211 = ssub.s32 %s18, 1
        // Predicated region
        $region13: #{tpu_custom_call.1} parent=11 // pred_check
          %p212 = pneg %p143
        $region14: #{tpu_custom_call.1} parent=11 // pred_check_branch
          %214 = sbr.rel (%p212) target = $region16
        $region15: #{tpu_custom_call.1} parent=11 // pred_region
          _
        $region16: #{tpu_custom_call.1} parent=11 // pred_fallthru
          _
      $region12: #{tpu_custom_call.1} parent=5 // pred_fallthru
        _
      %p215 = scmp.lt.s32.totalorder %s18, 4
      // Predicated region
      $region17: #{tpu_custom_call.1} parent=5 // pred_check
        %p216 = pneg %p215
      $region18: #{tpu_custom_call.1} parent=5 // pred_check_branch
        %218 = sbr.rel (%p216) target = $region20
      $region19: #{tpu_custom_call.1} parent=5 // pred_region
        // Predicated region
        $region21: #{tpu_custom_call.1} parent=19 // pred_check
          %p219 = pneg %p52
        $region22: #{tpu_custom_call.1} parent=19 // pred_check_branch
          %221 = sbr.rel (%p219) target = $region24
        $region23: #{tpu_custom_call.1} parent=19 // pred_region
          %s222 = smul.u32 8, %s26
          %s223 = ssub.s32 18, %s222
          %p224 = scmp.lt.s32.totalorder %s223, 8
          %s225 = scalar_select %p224, %s223, 8
          %s226 = smul.u32 128, %s225
          %s227 = smul.u32 %s226, 3
          %p228 = scmp.lt.s32.totalorder %s25, 1
          %s229 = scalar_select %p228, %s25, 1
          %p230 = scmp.lt.s32.totalorder %s222, 17
          %s231 = scalar_select %p230, %s222, 17
          %s232 = smul.addr %s231, 3
          %s233 = smul.addr %s229, 54
          %s234 = sadd.s32 %s232, %s233
          %s235 = smul.addr %s234, 8
          %s236 = scalar_lea.vmem %s0, %s235
          %s237 = smul.u32 8, %s26
          %s238 = ssub.s32 18, %s237
          %p239 = scmp.lt.s32.totalorder %s238, 8
          %s240 = scalar_select %p239, %s238, 8
          %s241 = smul.u32 128, %s240
          %s242 = smul.u32 %s241, 3
        $region24: #{tpu_custom_call.1} parent=19 // pred_fallthru
          _
        // Predicated region
        $region25: #{tpu_custom_call.1} parent=19 // pred_check
          %p243 = pneg %p84
        $region26: #{tpu_custom_call.1} parent=19 // pred_check_branch
          %245 = sbr.rel (%p243) target = $region28
        $region27: #{tpu_custom_call.1} parent=19 // pred_region
          %s246 = smul.u32 %s26, 8
          %s247 = sadd.s32 %s246, 8
          %p248 = scmp.lt.s32.totalorder %s25, 1
          %s249 = scalar_select %p248, %s25, 1
          %p250 = scmp.lt.s32.totalorder %s247, 17
          %s251 = scalar_select %p250, %s247, 17
          %s252 = smul.addr %s251, 3
          %s253 = smul.addr %s249, 54
          %s254 = sadd.s32 %s252, %s253
          %s255 = smul.addr %s254, 8
          %s256 = scalar_lea.vmem %s1, %s255
          %s257 = smul.u32 %s26, 8
          %s258 = sadd.s32 %s257, 8
        $region28: #{tpu_custom_call.1} parent=19 // pred_fallthru
          _
        // Predicated region
        $region29: #{tpu_custom_call.1} parent=19 // pred_check
          %p259 = pneg %p116
        $region30: #{tpu_custom_call.1} parent=19 // pred_check_branch
          %261 = sbr.rel (%p259) target = $region32
        $region31: #{tpu_custom_call.1} parent=19 // pred_region
          %s262 = smul.u32 %s26, 8
          %s263 = sadd.s32 %s262, 9
          %p264 = scmp.lt.s32.totalorder %s25, 1
          %s265 = scalar_select %p264, %s25, 1
          %p266 = scmp.lt.s32.totalorder %s263, 17
          %s267 = scalar_select %p266, %s263, 17
          %s268 = smul.addr %s267, 3
          %s269 = smul.addr %s265, 54
          %s270 = sadd.s32 %s268, %s269
          %s271 = smul.addr %s270, 8
          %s272 = scalar_lea.vmem %s2, %s271
          %s273 = smul.u32 %s26, 8
          %s274 = sadd.s32 %s273, 9
        $region32: #{tpu_custom_call.1} parent=19 // pred_fallthru
          _
      $region20: #{tpu_custom_call.1} parent=5 // pred_fallthru
        _
      %p275 = scmp.le.s32.totalorder 1, %s18
      %p276 = scmp.lt.s32.totalorder %s18, 5
      %p277 = pnand %p275, %p276
      %p278 = pneg %p277
      // Predicated region
      $region33: #{tpu_custom_call.1} parent=5 // pred_check
        _
      $region34: #{tpu_custom_call.1} parent=5 // pred_check_branch
        %280 = sbr.rel (%p277) target = $region36
      $region35: #{tpu_custom_call.1} parent=5 // pred_region
        %s281 = ssub.s32 %s18, 1
        %s282 = smul.u32 8, %s28
        %s283 = ssub.s32 18, %s282
        %p284 = scmp.lt.s32.totalorder %s283, 8
        %s285 = scalar_select %p284, %s283, 8
        %s286 = smul.u32 128, %s285
        %s287 = smul.u32 %s286, 3
        %p288 = scmp.lt.s32.totalorder %s27, 1
        %s289 = scalar_select %p288, %s27, 1
        %p290 = scmp.lt.s32.totalorder %s282, 17
        %s291 = scalar_select %p290, %s282, 17
        %s292 = smul.addr %s291, 3
        %s293 = smul.addr %s289, 54
        %s294 = sadd.s32 %s292, %s293
        %s295 = smul.addr %s294, 8
        %s296 = scalar_lea.vmem %s0, %s295
        %p297 = pneg %p58
        %p298 = pneg %p55
        %s299 = smul.u32 %s28, 8
        %s300 = sadd.s32 %s299, 8
        %p301 = scmp.lt.s32.totalorder %s27, 1
        %s302 = scalar_select %p301, %s27, 1
        %p303 = scmp.lt.s32.totalorder %s300, 17
        %s304 = scalar_select %p303, %s300, 17
        %s305 = smul.addr %s304, 3
        %s306 = smul.addr %s302, 54
        %s307 = sadd.s32 %s305, %s306
        %s308 = smul.addr %s307, 8
        %s309 = scalar_lea.vmem %s1, %s308
        %p310 = pneg %p90
        %p311 = pneg %p87
        %s312 = smul.u32 %s28, 8
        %s313 = sadd.s32 %s312, 9
        %p314 = scmp.lt.s32.totalorder %s27, 1
        %s315 = scalar_select %p314, %s27, 1
        %p316 = scmp.lt.s32.totalorder %s313, 17
        %s317 = scalar_select %p316, %s313, 17
        %s318 = smul.addr %s317, 3
        %s319 = smul.addr %s315, 54
        %s320 = sadd.s32 %s318, %s319
        %s321 = smul.addr %s320, 8
        %s322 = scalar_lea.vmem %s2, %s321
        %p323 = pneg %p122
        %p324 = pneg %p119
        %p325 = pneg %p143
        %p326 = pneg %p140
        %p327 = pneg %p171
        %p328 = pneg %p168
        %s329 = sand.u32 %s158, 1
        %s330 = scalar_lea.sflag [#allocation4], %s329
        %s331 = sand.u32 %s158, 1
        %s332 = smul.addr %s331, 128
        %s333 = scalar_lea.vmem [#allocation3], %s332
        %p334 = pneg %p197
        %p335 = pneg %p194
        %s336 = sand.u32 %s184, 1
        %s337 = scalar_lea.sflag [#allocation6], %s336
        %s338 = sand.u32 %s184, 1
        %s339 = smul.addr %s338, 2
        %s340 = scalar_lea.vmem [#allocation5], %s339
        %s341 = smul.u32 8, %s28
        %s342 = ssub.s32 18, %s341
        %p343 = scmp.lt.s32.totalorder %s342, 8
        %s344 = scalar_select %p343, %s342, 8
        %s345 = smul.u32 128, %s344
        %s346 = smul.u32 %s345, 3
        %p347 = scmp.lt.s32.totalorder %s27, 1
        %s348 = scalar_select %p347, %s27, 1
        %p349 = scmp.lt.s32.totalorder %s341, 17
        %s350 = scalar_select %p349, %s341, 17
        %s351 = smul.addr %s350, 3
        %s352 = smul.addr %s348, 54
        %s353 = sadd.s32 %s351, %s352
        %s354 = smul.addr %s353, 8
        %s355 = scalar_lea.vmem %s0, %s354
        %s356 = smul.u32 8, %s28
        %s357 = ssub.s32 18, %s356
        %p358 = scmp.lt.s32.totalorder %s357, 8
        %s359 = scalar_select %p358, %s357, 8
        %s360 = smul.u32 128, %s359
        %s361 = smul.u32 %s360, 3
        %s362 = smul.u32 %s28, 8
        %s363 = sadd.s32 %s362, 8
        %p364 = scmp.lt.s32.totalorder %s27, 1
        %s365 = scalar_select %p364, %s27, 1
        %p366 = scmp.lt.s32.totalorder %s363, 17
        %s367 = scalar_select %p366, %s363, 17
        %s368 = smul.addr %s367, 3
        %s369 = smul.addr %s365, 54
        %s370 = sadd.s32 %s368, %s369
        %s371 = smul.addr %s370, 8
        %s372 = scalar_lea.vmem %s1, %s371
        %s373 = smul.u32 %s28, 8
        %s374 = sadd.s32 %s373, 8
        %s375 = smul.u32 %s28, 8
        %s376 = sadd.s32 %s375, 9
        %p377 = scmp.lt.s32.totalorder %s27, 1
        %s378 = scalar_select %p377, %s27, 1
        %p379 = scmp.lt.s32.totalorder %s376, 17
        %s380 = scalar_select %p379, %s376, 17
        %s381 = smul.addr %s380, 3
        %s382 = smul.addr %s378, 54
        %s383 = sadd.s32 %s381, %s382
        %s384 = smul.addr %s383, 8
        %s385 = scalar_lea.vmem %s2, %s384
        %s386 = smul.u32 %s28, 8
        %s387 = sadd.s32 %s386, 9
        %s388 = smul.u32 16, %s28
        %v389 = vld [vmem:[%s355] sm:$0xff]
        %v390 = vld [vmem:[%s355 + $0x8] sm:$0xff]
        %v391 = vld [vmem:[%s355 + $0x18] sm:$0xff]
        %v392 = vld [vmem:[%s355 + $0x20] sm:$0xff]
        %v393 = vld [vmem:[%s355 + $0x30] sm:$0xff]
        %v394 = vld [vmem:[%s355 + $0x38] sm:$0xff]
        %v395 = vld [vmem:[%s355 + $0x48] sm:$0xff]
        %v396 = vld [vmem:[%s355 + $0x50] sm:$0xff]
        %v397 = vld [vmem:[%s355 + $0x60] sm:$0xff]
        %v398 = vld [vmem:[%s355 + $0x68] sm:$0xff]
        %v399 = vld [vmem:[%s355 + $0x78] sm:$0xff]
        %v400 = vld [vmem:[%s355 + $0x80] sm:$0xff]
        %v401 = vld [vmem:[%s355 + $0x90] sm:$0xff]
        %v402 = vld [vmem:[%s355 + $0x98] sm:$0xff]
        %v403 = vld [vmem:[%s355 + $0xa8] sm:$0xff]
        %v404 = vld [vmem:[%s355 + $0xb0] sm:$0xff]
        %vm405 = vcmask 31744
        %406 = vst.msk [vmem:[#allocation2] sm:$0xff] %vm405, %v389
        %407 = vst.msk [vmem:[#allocation2 + $0x8] sm:$0xff] %vm405, %v390
        %408 = vst.msk [vmem:[#allocation2 + $0x10] sm:$0xff] %vm405, %v391
        %409 = vst.msk [vmem:[#allocation2 + $0x18] sm:$0xff] %vm405, %v392
        %410 = vst.msk [vmem:[#allocation2 + $0x20] sm:$0xff] %vm405, %v393
        %411 = vst.msk [vmem:[#allocation2 + $0x28] sm:$0xff] %vm405, %v394
        %412 = vst.msk [vmem:[#allocation2 + $0x30] sm:$0xff] %vm405, %v395
        %413 = vst.msk [vmem:[#allocation2 + $0x38] sm:$0xff] %vm405, %v396
        %414 = vst.msk [vmem:[#allocation2 + $0x40] sm:$0xff] %vm405, %v397
        %415 = vst.msk [vmem:[#allocation2 + $0x48] sm:$0xff] %vm405, %v398
        %416 = vst.msk [vmem:[#allocation2 + $0x50] sm:$0xff] %vm405, %v399
        %417 = vst.msk [vmem:[#allocation2 + $0x58] sm:$0xff] %vm405, %v400
        %418 = vst.msk [vmem:[#allocation2 + $0x60] sm:$0xff] %vm405, %v401
        %419 = vst.msk [vmem:[#allocation2 + $0x68] sm:$0xff] %vm405, %v402
        %420 = vst.msk [vmem:[#allocation2 + $0x70] sm:$0xff] %vm405, %v403
        %421 = vst.msk [vmem:[#allocation2 + $0x78] sm:$0xff] %vm405, %v404
        %v422 = vld [vmem:[%s355 + $0x1] sm:$0xff]
        %v423 = vld [vmem:[%s355 + $0x9] sm:$0xff]
        %v424 = vld [vmem:[%s355 + $0x19] sm:$0xff]
        %v425 = vld [vmem:[%s355 + $0x21] sm:$0xff]
        %v426 = vld [vmem:[%s355 + $0x31] sm:$0xff]
        %v427 = vld [vmem:[%s355 + $0x39] sm:$0xff]
        %v428 = vld [vmem:[%s355 + $0x49] sm:$0xff]
        %v429 = vld [vmem:[%s355 + $0x51] sm:$0xff]
        %v430 = vld [vmem:[%s355 + $0x61] sm:$0xff]
        %v431 = vld [vmem:[%s355 + $0x69] sm:$0xff]
        %v432 = vld [vmem:[%s355 + $0x79] sm:$0xff]
        %v433 = vld [vmem:[%s355 + $0x81] sm:$0xff]
        %v434 = vld [vmem:[%s355 + $0x91] sm:$0xff]
        %v435 = vld [vmem:[%s355 + $0x99] sm:$0xff]
        %v436 = vld [vmem:[%s355 + $0xa9] sm:$0xff]
        %v437 = vld [vmem:[%s355 + $0xb1] sm:$0xff]
        %454 = vrot.lane.b32.xlu0 %v422, 4
        %v455 = vpop.permute.xlu0 %454
        %456 = vrot.lane.b32.xlu0 %v423, 4
        %v457 = vpop.permute.xlu0 %456
        %458 = vrot.lane.b32.xlu0 %v424, 4
        %v459 = vpop.permute.xlu0 %458
        %460 = vrot.lane.b32.xlu0 %v425, 4
        %v461 = vpop.permute.xlu0 %460
        %462 = vrot.lane.b32.xlu0 %v426, 4
        %v463 = vpop.permute.xlu0 %462
        %464 = vrot.lane.b32.xlu0 %v427, 4
        %v465 = vpop.permute.xlu0 %464
        %466 = vrot.lane.b32.xlu0 %v428, 4
        %v467 = vpop.permute.xlu0 %466
        %468 = vrot.lane.b32.xlu0 %v429, 4
        %v469 = vpop.permute.xlu0 %468
        %470 = vrot.lane.b32.xlu0 %v430, 4
        %v471 = vpop.permute.xlu0 %470
        %472 = vrot.lane.b32.xlu0 %v431, 4
        %v473 = vpop.permute.xlu0 %472
        %474 = vrot.lane.b32.xlu0 %v432, 4
        %v475 = vpop.permute.xlu0 %474
        %476 = vrot.lane.b32.xlu0 %v433, 4
        %v477 = vpop.permute.xlu0 %476
        %478 = vrot.lane.b32.xlu0 %v434, 4
        %v479 = vpop.permute.xlu0 %478
        %480 = vrot.lane.b32.xlu0 %v435, 4
        %v481 = vpop.permute.xlu0 %480
        %482 = vrot.lane.b32.xlu0 %v436, 4
        %v483 = vpop.permute.xlu0 %482
        %484 = vrot.lane.b32.xlu0 %v437, 4
        %v485 = vpop.permute.xlu0 %484
        %vm502 = vcmask 64544
        %503 = vst.msk [vmem:[#allocation2] sm:$0xff] %vm502, %v455
        %504 = vst.msk [vmem:[#allocation2 + $0x8] sm:$0xff] %vm502, %v457
        %505 = vst.msk [vmem:[#allocation2 + $0x10] sm:$0xff] %vm502, %v459
        %506 = vst.msk [vmem:[#allocation2 + $0x18] sm:$0xff] %vm502, %v461
        %507 = vst.msk [vmem:[#allocation2 + $0x20] sm:$0xff] %vm502, %v463
        %508 = vst.msk [vmem:[#allocation2 + $0x28] sm:$0xff] %vm502, %v465
        %509 = vst.msk [vmem:[#allocation2 + $0x30] sm:$0xff] %vm502, %v467
        %510 = vst.msk [vmem:[#allocation2 + $0x38] sm:$0xff] %vm502, %v469
        %511 = vst.msk [vmem:[#allocation2 + $0x40] sm:$0xff] %vm502, %v471
        %512 = vst.msk [vmem:[#allocation2 + $0x48] sm:$0xff] %vm502, %v473
        %513 = vst.msk [vmem:[#allocation2 + $0x50] sm:$0xff] %vm502, %v475
        %514 = vst.msk [vmem:[#allocation2 + $0x58] sm:$0xff] %vm502, %v477
        %515 = vst.msk [vmem:[#allocation2 + $0x60] sm:$0xff] %vm502, %v479
        %516 = vst.msk [vmem:[#allocation2 + $0x68] sm:$0xff] %vm502, %v481
        %517 = vst.msk [vmem:[#allocation2 + $0x70] sm:$0xff] %vm502, %v483
        %518 = vst.msk [vmem:[#allocation2 + $0x78] sm:$0xff] %vm502, %v485
        %v519 = vld [vmem:[%s355 + $0x2] sm:$0xff]
        %v520 = vld [vmem:[%s355 + $0xa] sm:$0xff]
        %v521 = vld [vmem:[%s355 + $0x1a] sm:$0xff]
        %v522 = vld [vmem:[%s355 + $0x22] sm:$0xff]
        %v523 = vld [vmem:[%s355 + $0x32] sm:$0xff]
        %v524 = vld [vmem:[%s355 + $0x3a] sm:$0xff]
        %v525 = vld [vmem:[%s355 + $0x4a] sm:$0xff]
        %v526 = vld [vmem:[%s355 + $0x52] sm:$0xff]
        %v527 = vld [vmem:[%s355 + $0x62] sm:$0xff]
        %v528 = vld [vmem:[%s355 + $0x6a] sm:$0xff]
        %v529 = vld [vmem:[%s355 + $0x7a] sm:$0xff]
        %v530 = vld [vmem:[%s355 + $0x82] sm:$0xff]
        %v531 = vld [vmem:[%s355 + $0x92] sm:$0xff]
        %v532 = vld [vmem:[%s355 + $0x9a] sm:$0xff]
        %v533 = vld [vmem:[%s355 + $0xaa] sm:$0xff]
        %v534 = vld [vmem:[%s355 + $0xb2] sm:$0xff]
        %551 = vrot.lane.b32.xlu0 %v519, 8
        %v552 = vpop.permute.xlu0 %551
        %553 = vrot.lane.b32.xlu0 %v520, 8
        %v554 = vpop.permute.xlu0 %553
        %555 = vrot.lane.b32.xlu0 %v521, 8
        %v556 = vpop.permute.xlu0 %555
        %557 = vrot.lane.b32.xlu0 %v522, 8
        %v558 = vpop.permute.xlu0 %557
        %559 = vrot.lane.b32.xlu0 %v523, 8
        %v560 = vpop.permute.xlu0 %559
        %561 = vrot.lane.b32.xlu0 %v524, 8
        %v562 = vpop.permute.xlu0 %561
        %563 = vrot.lane.b32.xlu0 %v525, 8
        %v564 = vpop.permute.xlu0 %563
        %565 = vrot.lane.b32.xlu0 %v526, 8
        %v566 = vpop.permute.xlu0 %565
        %567 = vrot.lane.b32.xlu0 %v527, 8
        %v568 = vpop.permute.xlu0 %567
        %569 = vrot.lane.b32.xlu0 %v528, 8
        %v570 = vpop.permute.xlu0 %569
        %571 = vrot.lane.b32.xlu0 %v529, 8
        %v572 = vpop.permute.xlu0 %571
        %573 = vrot.lane.b32.xlu0 %v530, 8
        %v574 = vpop.permute.xlu0 %573
        %575 = vrot.lane.b32.xlu0 %v531, 8
        %v576 = vpop.permute.xlu0 %575
        %577 = vrot.lane.b32.xlu0 %v532, 8
        %v578 = vpop.permute.xlu0 %577
        %579 = vrot.lane.b32.xlu0 %v533, 8
        %v580 = vpop.permute.xlu0 %579
        %581 = vrot.lane.b32.xlu0 %v534, 8
        %v582 = vpop.permute.xlu0 %581
        %vm599 = vcmask 97344
        %600 = vst.msk [vmem:[#allocation2] sm:$0xff] %vm599, %v552
        %601 = vst.msk [vmem:[#allocation2 + $0x8] sm:$0xff] %vm599, %v554
        %602 = vst.msk [vmem:[#allocation2 + $0x10] sm:$0xff] %vm599, %v556
        %603 = vst.msk [vmem:[#allocation2 + $0x18] sm:$0xff] %vm599, %v558
        %604 = vst.msk [vmem:[#allocation2 + $0x20] sm:$0xff] %vm599, %v560
        %605 = vst.msk [vmem:[#allocation2 + $0x28] sm:$0xff] %vm599, %v562
        %606 = vst.msk [vmem:[#allocation2 + $0x30] sm:$0xff] %vm599, %v564
        %607 = vst.msk [vmem:[#allocation2 + $0x38] sm:$0xff] %vm599, %v566
        %608 = vst.msk [vmem:[#allocation2 + $0x40] sm:$0xff] %vm599, %v568
        %609 = vst.msk [vmem:[#allocation2 + $0x48] sm:$0xff] %vm599, %v570
        %610 = vst.msk [vmem:[#allocation2 + $0x50] sm:$0xff] %vm599, %v572
        %611 = vst.msk [vmem:[#allocation2 + $0x58] sm:$0xff] %vm599, %v574
        %612 = vst.msk [vmem:[#allocation2 + $0x60] sm:$0xff] %vm599, %v576
        %613 = vst.msk [vmem:[#allocation2 + $0x68] sm:$0xff] %vm599, %v578
        %614 = vst.msk [vmem:[#allocation2 + $0x70] sm:$0xff] %vm599, %v580
        %615 = vst.msk [vmem:[#allocation2 + $0x78] sm:$0xff] %vm599, %v582
        %s616 = scalar_lea.vmem %s355, 24
        %v617 = vld [vmem:[%s616] sm:$0xff]
        %v618 = vld [vmem:[%s616 + $0x8] sm:$0xff]
        %v619 = vld [vmem:[%s616 + $0x18] sm:$0xff]
        %v620 = vld [vmem:[%s616 + $0x20] sm:$0xff]
        %v621 = vld [vmem:[%s616 + $0x30] sm:$0xff]
        %v622 = vld [vmem:[%s616 + $0x38] sm:$0xff]
        %v623 = vld [vmem:[%s616 + $0x48] sm:$0xff]
        %v624 = vld [vmem:[%s616 + $0x50] sm:$0xff]
        %v625 = vld [vmem:[%s616 + $0x60] sm:$0xff]
        %v626 = vld [vmem:[%s616 + $0x68] sm:$0xff]
        %v627 = vld [vmem:[%s616 + $0x78] sm:$0xff]
        %v628 = vld [vmem:[%s616 + $0x80] sm:$0xff]
        %v629 = vld [vmem:[%s616 + $0x90] sm:$0xff]
        %v630 = vld [vmem:[%s616 + $0x98] sm:$0xff]
        %645 = vrot.lane.b32.xlu0 %v617, 12
        %v646 = vpop.permute.xlu0 %645
        %647 = vrot.lane.b32.xlu0 %v618, 12
        %v648 = vpop.permute.xlu0 %647
        %649 = vrot.lane.b32.xlu0 %v619, 12
        %v650 = vpop.permute.xlu0 %649
        %651 = vrot.lane.b32.xlu0 %v620, 12
        %v652 = vpop.permute.xlu0 %651
        %653 = vrot.lane.b32.xlu0 %v621, 12
        %v654 = vpop.permute.xlu0 %653
        %655 = vrot.lane.b32.xlu0 %v622, 12
        %v656 = vpop.permute.xlu0 %655
        %657 = vrot.lane.b32.xlu0 %v623, 12
        %v658 = vpop.permute.xlu0 %657
        %659 = vrot.lane.b32.xlu0 %v624, 12
        %v660 = vpop.permute.xlu0 %659
        %661 = vrot.lane.b32.xlu0 %v625, 12
        %v662 = vpop.permute.xlu0 %661
        %663 = vrot.lane.b32.xlu0 %v626, 12
        %v664 = vpop.permute.xlu0 %663
        %665 = vrot.lane.b32.xlu0 %v627, 12
        %v666 = vpop.permute.xlu0 %665
        %667 = vrot.lane.b32.xlu0 %v628, 12
        %v668 = vpop.permute.xlu0 %667
        %669 = vrot.lane.b32.xlu0 %v629, 12
        %v670 = vpop.permute.xlu0 %669
        %671 = vrot.lane.b32.xlu0 %v630, 12
        %v672 = vpop.permute.xlu0 %671
        %vm687 = vcmask 130144
        %688 = vst.msk [vmem:[#allocation2] sm:$0xff] %vm687, %v646
        %689 = vst.msk [vmem:[#allocation2 + $0x8] sm:$0xff] %vm687, %v648
        %690 = vst.msk [vmem:[#allocation2 + $0x10] sm:$0xff] %vm687, %v650
        %691 = vst.msk [vmem:[#allocation2 + $0x18] sm:$0xff] %vm687, %v652
        %692 = vst.msk [vmem:[#allocation2 + $0x20] sm:$0xff] %vm687, %v654
        %693 = vst.msk [vmem:[#allocation2 + $0x28] sm:$0xff] %vm687, %v656
        %694 = vst.msk [vmem:[#allocation2 + $0x30] sm:$0xff] %vm687, %v658
        %695 = vst.msk [vmem:[#allocation2 + $0x38] sm:$0xff] %vm687, %v660
        %696 = vst.msk [vmem:[#allocation2 + $0x40] sm:$0xff] %vm687, %v662
        %697 = vst.msk [vmem:[#allocation2 + $0x48] sm:$0xff] %vm687, %v664
        %698 = vst.msk [vmem:[#allocation2 + $0x50] sm:$0xff] %vm687, %v666
        %699 = vst.msk [vmem:[#allocation2 + $0x58] sm:$0xff] %vm687, %v668
        %700 = vst.msk [vmem:[#allocation2 + $0x60] sm:$0xff] %vm687, %v670
        %701 = vst.msk [vmem:[#allocation2 + $0x68] sm:$0xff] %vm687, %v672
        %v702 = vld [vmem:[%s372] sm:$0xff]
        %v703 = vld [vmem:[%s372 + $0x8] sm:$0xff]
        %706 = vrot.lane.b32.xlu0 %v702, 12
        %v707 = vpop.permute.xlu0 %706
        %708 = vrot.lane.b32.xlu0 %v703, 12
        %v709 = vpop.permute.xlu0 %708
        %712 = vst.msk [vmem:[#allocation2 + $0x70] sm:$0xff] %vm687, %v707
        %713 = vst.msk [vmem:[#allocation2 + $0x78] sm:$0xff] %vm687, %v709
        %v714 = vld [vmem:[%s616 + $0x1] sm:$0xff]
        %v715 = vld [vmem:[%s616 + $0x9] sm:$0xff]
        %v716 = vld [vmem:[%s616 + $0x19] sm:$0xff]
        %v717 = vld [vmem:[%s616 + $0x21] sm:$0xff]
        %v718 = vld [vmem:[%s616 + $0x31] sm:$0xff]
        %v719 = vld [vmem:[%s616 + $0x39] sm:$0xff]
        %v720 = vld [vmem:[%s616 + $0x49] sm:$0xff]
        %v721 = vld [vmem:[%s616 + $0x51] sm:$0xff]
        %v722 = vld [vmem:[%s616 + $0x61] sm:$0xff]
        %v723 = vld [vmem:[%s616 + $0x69] sm:$0xff]
        %v724 = vld [vmem:[%s616 + $0x79] sm:$0xff]
        %v725 = vld [vmem:[%s616 + $0x81] sm:$0xff]
        %v726 = vld [vmem:[%s616 + $0x91] sm:$0xff]
        %v727 = vld [vmem:[%s616 + $0x99] sm:$0xff]
        %742 = vrot.lane.b32.xlu0 %v714, 16
        %v743 = vpop.permute.xlu0 %742
        %744 = vrot.lane.b32.xlu0 %v715, 16
        %v745 = vpop.permute.xlu0 %744
        %746 = vrot.lane.b32.xlu0 %v716, 16
        %v747 = vpop.permute.xlu0 %746
        %748 = vrot.lane.b32.xlu0 %v717, 16
        %v749 = vpop.permute.xlu0 %748
        %750 = vrot.lane.b32.xlu0 %v718, 16
        %v751 = vpop.permute.xlu0 %750
        %752 = vrot.lane.b32.xlu0 %v719, 16
        %v753 = vpop.permute.xlu0 %752
        %754 = vrot.lane.b32.xlu0 %v720, 16
        %v755 = vpop.permute.xlu0 %754
        %756 = vrot.lane.b32.xlu0 %v721, 16
        %v757 = vpop.permute.xlu0 %756
        %758 = vrot.lane.b32.xlu0 %v722, 16
        %v759 = vpop.permute.xlu0 %758
        %760 = vrot.lane.b32.xlu0 %v723, 16
        %v761 = vpop.permute.xlu0 %760
        %762 = vrot.lane.b32.xlu0 %v724, 16
        %v763 = vpop.permute.xlu0 %762
        %764 = vrot.lane.b32.xlu0 %v725, 16
        %v765 = vpop.permute.xlu0 %764
        %766 = vrot.lane.b32.xlu0 %v726, 16
        %v767 = vpop.permute.xlu0 %766
        %768 = vrot.lane.b32.xlu0 %v727, 16
        %v769 = vpop.permute.xlu0 %768
        %vm784 = vcmask 162944
        %785 = vst.msk [vmem:[#allocation2] sm:$0xff] %vm784, %v743
        %786 = vst.msk [vmem:[#allocation2 + $0x8] sm:$0xff] %vm784, %v745
        %787 = vst.msk [vmem:[#allocation2 + $0x10] sm:$0xff] %vm784, %v747
        %788 = vst.msk [vmem:[#allocation2 + $0x18] sm:$0xff] %vm784, %v749
        %789 = vst.msk [vmem:[#allocation2 + $0x20] sm:$0xff] %vm784, %v751
        %790 = vst.msk [vmem:[#allocation2 + $0x28] sm:$0xff] %vm784, %v753
        %791 = vst.msk [vmem:[#allocation2 + $0x30] sm:$0xff] %vm784, %v755
        %792 = vst.msk [vmem:[#allocation2 + $0x38] sm:$0xff] %vm784, %v757
        %793 = vst.msk [vmem:[#allocation2 + $0x40] sm:$0xff] %vm784, %v759
        %794 = vst.msk [vmem:[#allocation2 + $0x48] sm:$0xff] %vm784, %v761
        %795 = vst.msk [vmem:[#allocation2 + $0x50] sm:$0xff] %vm784, %v763
        %796 = vst.msk [vmem:[#allocation2 + $0x58] sm:$0xff] %vm784, %v765
        %797 = vst.msk [vmem:[#allocation2 + $0x60] sm:$0xff] %vm784, %v767
        %798 = vst.msk [vmem:[#allocation2 + $0x68] sm:$0xff] %vm784, %v769
        %v799 = vld [vmem:[%s372 + $0x1] sm:$0xff]
        %v800 = vld [vmem:[%s372 + $0x9] sm:$0xff]
        %803 = vrot.lane.b32.xlu0 %v799, 16
        %v804 = vpop.permute.xlu0 %803
        %805 = vrot.lane.b32.xlu0 %v800, 16
        %v806 = vpop.permute.xlu0 %805
        %809 = vst.msk [vmem:[#allocation2 + $0x70] sm:$0xff] %vm784, %v804
        %810 = vst.msk [vmem:[#allocation2 + $0x78] sm:$0xff] %vm784, %v806
        %v811 = vld [vmem:[%s616 + $0x2] sm:$0xff]
        %v812 = vld [vmem:[%s616 + $0xa] sm:$0xff]
        %v813 = vld [vmem:[%s616 + $0x1a] sm:$0xff]
        %v814 = vld [vmem:[%s616 + $0x22] sm:$0xff]
        %v815 = vld [vmem:[%s616 + $0x32] sm:$0xff]
        %v816 = vld [vmem:[%s616 + $0x3a] sm:$0xff]
        %v817 = vld [vmem:[%s616 + $0x4a] sm:$0xff]
        %v818 = vld [vmem:[%s616 + $0x52] sm:$0xff]
        %v819 = vld [vmem:[%s616 + $0x62] sm:$0xff]
        %v820 = vld [vmem:[%s616 + $0x6a] sm:$0xff]
        %v821 = vld [vmem:[%s616 + $0x7a] sm:$0xff]
        %v822 = vld [vmem:[%s616 + $0x82] sm:$0xff]
        %v823 = vld [vmem:[%s616 + $0x92] sm:$0xff]
        %v824 = vld [vmem:[%s616 + $0x9a] sm:$0xff]
        %839 = vrot.lane.b32.xlu0 %v811, 20
        %v840 = vpop.permute.xlu0 %839
        %841 = vrot.lane.b32.xlu0 %v812, 20
        %v842 = vpop.permute.xlu0 %841
        %843 = vrot.lane.b32.xlu0 %v813, 20
        %v844 = vpop.permute.xlu0 %843
        %845 = vrot.lane.b32.xlu0 %v814, 20
        %v846 = vpop.permute.xlu0 %845
        %847 = vrot.lane.b32.xlu0 %v815, 20
        %v848 = vpop.permute.xlu0 %847
        %849 = vrot.lane.b32.xlu0 %v816, 20
        %v850 = vpop.permute.xlu0 %849
        %851 = vrot.lane.b32.xlu0 %v817, 20
        %v852 = vpop.permute.xlu0 %851
        %853 = vrot.lane.b32.xlu0 %v818, 20
        %v854 = vpop.permute.xlu0 %853
        %855 = vrot.lane.b32.xlu0 %v819, 20
        %v856 = vpop.permute.xlu0 %855
        %857 = vrot.lane.b32.xlu0 %v820, 20
        %v858 = vpop.permute.xlu0 %857
        %859 = vrot.lane.b32.xlu0 %v821, 20
        %v860 = vpop.permute.xlu0 %859
        %861 = vrot.lane.b32.xlu0 %v822, 20
        %v862 = vpop.permute.xlu0 %861
        %863 = vrot.lane.b32.xlu0 %v823, 20
        %v864 = vpop.permute.xlu0 %863
        %865 = vrot.lane.b32.xlu0 %v824, 20
        %v866 = vpop.permute.xlu0 %865
        %vm881 = vcmask 195744
        %882 = vst.msk [vmem:[#allocation2] sm:$0xff] %vm881, %v840
        %883 = vst.msk [vmem:[#allocation2 + $0x8] sm:$0xff] %vm881, %v842
        %884 = vst.msk [vmem:[#allocation2 + $0x10] sm:$0xff] %vm881, %v844
        %885 = vst.msk [vmem:[#allocation2 + $0x18] sm:$0xff] %vm881, %v846
        %886 = vst.msk [vmem:[#allocation2 + $0x20] sm:$0xff] %vm881, %v848
        %887 = vst.msk [vmem:[#allocation2 + $0x28] sm:$0xff] %vm881, %v850
        %888 = vst.msk [vmem:[#allocation2 + $0x30] sm:$0xff] %vm881, %v852
        %889 = vst.msk [vmem:[#allocation2 + $0x38] sm:$0xff] %vm881, %v854
        %890 = vst.msk [vmem:[#allocation2 + $0x40] sm:$0xff] %vm881, %v856
        %891 = vst.msk [vmem:[#allocation2 + $0x48] sm:$0xff] %vm881, %v858
        %892 = vst.msk [vmem:[#allocation2 + $0x50] sm:$0xff] %vm881, %v860
        %893 = vst.msk [vmem:[#allocation2 + $0x58] sm:$0xff] %vm881, %v862
        %894 = vst.msk [vmem:[#allocation2 + $0x60] sm:$0xff] %vm881, %v864
        %895 = vst.msk [vmem:[#allocation2 + $0x68] sm:$0xff] %vm881, %v866
        %v896 = vld [vmem:[%s372 + $0x2] sm:$0xff]
        %v897 = vld [vmem:[%s372 + $0xa] sm:$0xff]
        %900 = vrot.lane.b32.xlu0 %v896, 20
        %v901 = vpop.permute.xlu0 %900
        %902 = vrot.lane.b32.xlu0 %v897, 20
        %v903 = vpop.permute.xlu0 %902
        %906 = vst.msk [vmem:[#allocation2 + $0x70] sm:$0xff] %vm881, %v901
        %907 = vst.msk [vmem:[#allocation2 + $0x78] sm:$0xff] %vm881, %v903
        %s908 = scalar_lea.vmem %s355, 48
        %v909 = vld [vmem:[%s908] sm:$0xff]
        %v910 = vld [vmem:[%s908 + $0x8] sm:$0xff]
        %v911 = vld [vmem:[%s908 + $0x18] sm:$0xff]
        %v912 = vld [vmem:[%s908 + $0x20] sm:$0xff]
        %v913 = vld [vmem:[%s908 + $0x30] sm:$0xff]
        %v914 = vld [vmem:[%s908 + $0x38] sm:$0xff]
        %v915 = vld [vmem:[%s908 + $0x48] sm:$0xff]
        %v916 = vld [vmem:[%s908 + $0x50] sm:$0xff]
        %v917 = vld [vmem:[%s908 + $0x60] sm:$0xff]
        %v918 = vld [vmem:[%s908 + $0x68] sm:$0xff]
        %v919 = vld [vmem:[%s908 + $0x78] sm:$0xff]
        %v920 = vld [vmem:[%s908 + $0x80] sm:$0xff]
        %933 = vrot.lane.b32.xlu0 %v909, 24
        %v934 = vpop.permute.xlu0 %933
        %935 = vrot.lane.b32.xlu0 %v910, 24
        %v936 = vpop.permute.xlu0 %935
        %937 = vrot.lane.b32.xlu0 %v911, 24
        %v938 = vpop.permute.xlu0 %937
        %939 = vrot.lane.b32.xlu0 %v912, 24
        %v940 = vpop.permute.xlu0 %939
        %941 = vrot.lane.b32.xlu0 %v913, 24
        %v942 = vpop.permute.xlu0 %941
        %943 = vrot.lane.b32.xlu0 %v914, 24
        %v944 = vpop.permute.xlu0 %943
        %945 = vrot.lane.b32.xlu0 %v915, 24
        %v946 = vpop.permute.xlu0 %945
        %947 = vrot.lane.b32.xlu0 %v916, 24
        %v948 = vpop.permute.xlu0 %947
        %949 = vrot.lane.b32.xlu0 %v917, 24
        %v950 = vpop.permute.xlu0 %949
        %951 = vrot.lane.b32.xlu0 %v918, 24
        %v952 = vpop.permute.xlu0 %951
        %953 = vrot.lane.b32.xlu0 %v919, 24
        %v954 = vpop.permute.xlu0 %953
        %955 = vrot.lane.b32.xlu0 %v920, 24
        %v956 = vpop.permute.xlu0 %955
        %vm969 = vcmask 228544
        %970 = vst.msk [vmem:[#allocation2] sm:$0xff] %vm969, %v934
        %971 = vst.msk [vmem:[#allocation2 + $0x8] sm:$0xff] %vm969, %v936
        %972 = vst.msk [vmem:[#allocation2 + $0x10] sm:$0xff] %vm969, %v938
        %973 = vst.msk [vmem:[#allocation2 + $0x18] sm:$0xff] %vm969, %v940
        %974 = vst.msk [vmem:[#allocation2 + $0x20] sm:$0xff] %vm969, %v942
        %975 = vst.msk [vmem:[#allocation2 + $0x28] sm:$0xff] %vm969, %v944
        %976 = vst.msk [vmem:[#allocation2 + $0x30] sm:$0xff] %vm969, %v946
        %977 = vst.msk [vmem:[#allocation2 + $0x38] sm:$0xff] %vm969, %v948
        %978 = vst.msk [vmem:[#allocation2 + $0x40] sm:$0xff] %vm969, %v950
        %979 = vst.msk [vmem:[#allocation2 + $0x48] sm:$0xff] %vm969, %v952
        %980 = vst.msk [vmem:[#allocation2 + $0x50] sm:$0xff] %vm969, %v954
        %981 = vst.msk [vmem:[#allocation2 + $0x58] sm:$0xff] %vm969, %v956
        %v982 = vld [vmem:[%s372] sm:$0xff]
        %v983 = vld [vmem:[%s372 + $0x8] sm:$0xff]
        %986 = vrot.lane.b32.xlu0 %v982, 24
        %v987 = vpop.permute.xlu0 %986
        %988 = vrot.lane.b32.xlu0 %v983, 24
        %v989 = vpop.permute.xlu0 %988
        %992 = vst.msk [vmem:[#allocation2 + $0x60] sm:$0xff] %vm969, %v987
        %993 = vst.msk [vmem:[#allocation2 + $0x68] sm:$0xff] %vm969, %v989
        %v994 = vld [vmem:[%s385] sm:$0xff]
        %v995 = vld [vmem:[%s385 + $0x8] sm:$0xff]
        %998 = vrot.lane.b32.xlu0 %v994, 24
        %v999 = vpop.permute.xlu0 %998
        %1000 = vrot.lane.b32.xlu0 %v995, 24
        %v1001 = vpop.permute.xlu0 %1000
        %1004 = vst.msk [vmem:[#allocation2 + $0x70] sm:$0xff] %vm969, %v999
        %1005 = vst.msk [vmem:[#allocation2 + $0x78] sm:$0xff] %vm969, %v1001
        %v1006 = vld [vmem:[%s908 + $0x1] sm:$0xff]
        %v1007 = vld [vmem:[%s908 + $0x9] sm:$0xff]
        %v1008 = vld [vmem:[%s908 + $0x19] sm:$0xff]
        %v1009 = vld [vmem:[%s908 + $0x21] sm:$0xff]
        %v1010 = vld [vmem:[%s908 + $0x31] sm:$0xff]
        %v1011 = vld [vmem:[%s908 + $0x39] sm:$0xff]
        %v1012 = vld [vmem:[%s908 + $0x49] sm:$0xff]
        %v1013 = vld [vmem:[%s908 + $0x51] sm:$0xff]
        %v1014 = vld [vmem:[%s908 + $0x61] sm:$0xff]
        %v1015 = vld [vmem:[%s908 + $0x69] sm:$0xff]
        %v1016 = vld [vmem:[%s908 + $0x79] sm:$0xff]
        %v1017 = vld [vmem:[%s908 + $0x81] sm:$0xff]
        %1030 = vrot.lane.b32.xlu0 %v1006, 28
        %v1031 = vpop.permute.xlu0 %1030
        %1032 = vrot.lane.b32.xlu0 %v1007, 28
        %v1033 = vpop.permute.xlu0 %1032
        %1034 = vrot.lane.b32.xlu0 %v1008, 28
        %v1035 = vpop.permute.xlu0 %1034
        %1036 = vrot.lane.b32.xlu0 %v1009, 28
        %v1037 = vpop.permute.xlu0 %1036
        %1038 = vrot.lane.b32.xlu0 %v1010, 28
        %v1039 = vpop.permute.xlu0 %1038
        %1040 = vrot.lane.b32.xlu0 %v1011, 28
        %v1041 = vpop.permute.xlu0 %1040
        %1042 = vrot.lane.b32.xlu0 %v1012, 28
        %v1043 = vpop.permute.xlu0 %1042
        %1044 = vrot.lane.b32.xlu0 %v1013, 28
        %v1045 = vpop.permute.xlu0 %1044
        %1046 = vrot.lane.b32.xlu0 %v1014, 28
        %v1047 = vpop.permute.xlu0 %1046
        %1048 = vrot.lane.b32.xlu0 %v1015, 28
        %v1049 = vpop.permute.xlu0 %1048
        %1050 = vrot.lane.b32.xlu0 %v1016, 28
        %v1051 = vpop.permute.xlu0 %1050
        %1052 = vrot.lane.b32.xlu0 %v1017, 28
        %v1053 = vpop.permute.xlu0 %1052
        %vm1066 = vcmask 261344
        %1067 = vst.msk [vmem:[#allocation2] sm:$0xff] %vm1066, %v1031
        %1068 = vst.msk [vmem:[#allocation2 + $0x8] sm:$0xff] %vm1066, %v1033
        %1069 = vst.msk [vmem:[#allocation2 + $0x10] sm:$0xff] %vm1066, %v1035
        %1070 = vst.msk [vmem:[#allocation2 + $0x18] sm:$0xff] %vm1066, %v1037
        %1071 = vst.msk [vmem:[#allocation2 + $0x20] sm:$0xff] %vm1066, %v1039
        %1072 = vst.msk [vmem:[#allocation2 + $0x28] sm:$0xff] %vm1066, %v1041
        %1073 = vst.msk [vmem:[#allocation2 + $0x30] sm:$0xff] %vm1066, %v1043
        %1074 = vst.msk [vmem:[#allocation2 + $0x38] sm:$0xff] %vm1066, %v1045
        %1075 = vst.msk [vmem:[#allocation2 + $0x40] sm:$0xff] %vm1066, %v1047
        %1076 = vst.msk [vmem:[#allocation2 + $0x48] sm:$0xff] %vm1066, %v1049
        %1077 = vst.msk [vmem:[#allocation2 + $0x50] sm:$0xff] %vm1066, %v1051
        %1078 = vst.msk [vmem:[#allocation2 + $0x58] sm:$0xff] %vm1066, %v1053
        %v1079 = vld [vmem:[%s372 + $0x1] sm:$0xff]
        %v1080 = vld [vmem:[%s372 + $0x9] sm:$0xff]
        %1083 = vrot.lane.b32.xlu0 %v1079, 28
        %v1084 = vpop.permute.xlu0 %1083
        %1085 = vrot.lane.b32.xlu0 %v1080, 28
        %v1086 = vpop.permute.xlu0 %1085
        %1089 = vst.msk [vmem:[#allocation2 + $0x60] sm:$0xff] %vm1066, %v1084
        %1090 = vst.msk [vmem:[#allocation2 + $0x68] sm:$0xff] %vm1066, %v1086
        %v1091 = vld [vmem:[%s385 + $0x1] sm:$0xff]
        %v1092 = vld [vmem:[%s385 + $0x9] sm:$0xff]
        %1095 = vrot.lane.b32.xlu0 %v1091, 28
        %v1096 = vpop.permute.xlu0 %1095
        %1097 = vrot.lane.b32.xlu0 %v1092, 28
        %v1098 = vpop.permute.xlu0 %1097
        %1101 = vst.msk [vmem:[#allocation2 + $0x70] sm:$0xff] %vm1066, %v1096
        %1102 = vst.msk [vmem:[#allocation2 + $0x78] sm:$0xff] %vm1066, %v1098
        %v1103 = vld [vmem:[%s908 + $0x2] sm:$0xff]
        %v1104 = vld [vmem:[%s908 + $0xa] sm:$0xff]
        %v1105 = vld [vmem:[%s908 + $0x1a] sm:$0xff]
        %v1106 = vld [vmem:[%s908 + $0x22] sm:$0xff]
        %v1107 = vld [vmem:[%s908 + $0x32] sm:$0xff]
        %v1108 = vld [vmem:[%s908 + $0x3a] sm:$0xff]
        %v1109 = vld [vmem:[%s908 + $0x4a] sm:$0xff]
        %v1110 = vld [vmem:[%s908 + $0x52] sm:$0xff]
        %v1111 = vld [vmem:[%s908 + $0x62] sm:$0xff]
        %v1112 = vld [vmem:[%s908 + $0x6a] sm:$0xff]
        %v1113 = vld [vmem:[%s908 + $0x7a] sm:$0xff]
        %v1114 = vld [vmem:[%s908 + $0x82] sm:$0xff]
        %1127 = vrot.lane.b32.xlu0 %v1103, 32
        %v1128 = vpop.permute.xlu0 %1127
        %1129 = vrot.lane.b32.xlu0 %v1104, 32
        %v1130 = vpop.permute.xlu0 %1129
        %1131 = vrot.lane.b32.xlu0 %v1105, 32
        %v1132 = vpop.permute.xlu0 %1131
        %1133 = vrot.lane.b32.xlu0 %v1106, 32
        %v1134 = vpop.permute.xlu0 %1133
        %1135 = vrot.lane.b32.xlu0 %v1107, 32
        %v1136 = vpop.permute.xlu0 %1135
        %1137 = vrot.lane.b32.xlu0 %v1108, 32
        %v1138 = vpop.permute.xlu0 %1137
        %1139 = vrot.lane.b32.xlu0 %v1109, 32
        %v1140 = vpop.permute.xlu0 %1139
        %1141 = vrot.lane.b32.xlu0 %v1110, 32
        %v1142 = vpop.permute.xlu0 %1141
        %1143 = vrot.lane.b32.xlu0 %v1111, 32
        %v1144 = vpop.permute.xlu0 %1143
        %1145 = vrot.lane.b32.xlu0 %v1112, 32
        %v1146 = vpop.permute.xlu0 %1145
        %1147 = vrot.lane.b32.xlu0 %v1113, 32
        %v1148 = vpop.permute.xlu0 %1147
        %1149 = vrot.lane.b32.xlu0 %v1114, 32
        %v1150 = vpop.permute.xlu0 %1149
        %vm1163 = vcmask 294144
        %1164 = vst.msk [vmem:[#allocation2] sm:$0xff] %vm1163, %v1128
        %1165 = vst.msk [vmem:[#allocation2 + $0x8] sm:$0xff] %vm1163, %v1130
        %1166 = vst.msk [vmem:[#allocation2 + $0x10] sm:$0xff] %vm1163, %v1132
        %1167 = vst.msk [vmem:[#allocation2 + $0x18] sm:$0xff] %vm1163, %v1134
        %1168 = vst.msk [vmem:[#allocation2 + $0x20] sm:$0xff] %vm1163, %v1136
        %1169 = vst.msk [vmem:[#allocation2 + $0x28] sm:$0xff] %vm1163, %v1138
        %1170 = vst.msk [vmem:[#allocation2 + $0x30] sm:$0xff] %vm1163, %v1140
        %1171 = vst.msk [vmem:[#allocation2 + $0x38] sm:$0xff] %vm1163, %v1142
        %1172 = vst.msk [vmem:[#allocation2 + $0x40] sm:$0xff] %vm1163, %v1144
        %1173 = vst.msk [vmem:[#allocation2 + $0x48] sm:$0xff] %vm1163, %v1146
        %1174 = vst.msk [vmem:[#allocation2 + $0x50] sm:$0xff] %vm1163, %v1148
        %1175 = vst.msk [vmem:[#allocation2 + $0x58] sm:$0xff] %vm1163, %v1150
        %v1176 = vld [vmem:[%s372 + $0x2] sm:$0xff]
        %v1177 = vld [vmem:[%s372 + $0xa] sm:$0xff]
        %1180 = vrot.lane.b32.xlu0 %v1176, 32
        %v1181 = vpop.permute.xlu0 %1180
        %1182 = vrot.lane.b32.xlu0 %v1177, 32
        %v1183 = vpop.permute.xlu0 %1182
        %1186 = vst.msk [vmem:[#allocation2 + $0x60] sm:$0xff] %vm1163, %v1181
        %1187 = vst.msk [vmem:[#allocation2 + $0x68] sm:$0xff] %vm1163, %v1183
        %v1188 = vld [vmem:[%s385 + $0x2] sm:$0xff]
        %v1189 = vld [vmem:[%s385 + $0xa] sm:$0xff]
        %1192 = vrot.lane.b32.xlu0 %v1188, 32
        %v1193 = vpop.permute.xlu0 %1192
        %1194 = vrot.lane.b32.xlu0 %v1189, 32
        %v1195 = vpop.permute.xlu0 %1194
        %1198 = vst.msk [vmem:[#allocation2 + $0x70] sm:$0xff] %vm1163, %v1193
        %1199 = vst.msk [vmem:[#allocation2 + $0x78] sm:$0xff] %vm1163, %v1195
        %v1200 = vld [vmem:[#allocation2] sm:$0xff]
        %v1201 = vld [vmem:[#allocation2 + $0x8] sm:$0xff]
        %v1202 = vld [vmem:[#allocation2 + $0x10] sm:$0xff]
        %v1203 = vld [vmem:[#allocation2 + $0x18] sm:$0xff]
        %v1204 = vld [vmem:[#allocation2 + $0x20] sm:$0xff]
        %v1205 = vld [vmem:[#allocation2 + $0x28] sm:$0xff]
        %v1206 = vld [vmem:[#allocation2 + $0x30] sm:$0xff]
        %v1207 = vld [vmem:[#allocation2 + $0x38] sm:$0xff]
        %v1208 = vld [vmem:[#allocation2 + $0x40] sm:$0xff]
        %v1209 = vld [vmem:[#allocation2 + $0x48] sm:$0xff]
        %v1210 = vld [vmem:[#allocation2 + $0x50] sm:$0xff]
        %v1211 = vld [vmem:[#allocation2 + $0x58] sm:$0xff]
        %v1212 = vld [vmem:[#allocation2 + $0x60] sm:$0xff]
        %v1213 = vld [vmem:[#allocation2 + $0x68] sm:$0xff]
        %v1214 = vld [vmem:[#allocation2 + $0x70] sm:$0xff]
        %v1215 = vld [vmem:[#allocation2 + $0x78] sm:$0xff]
        %v1216 = vld [vmem:[%s3] sm:$0xff]
        %v1217 = vld [vmem:[%s3 + $0x8] sm:$0xff]
        %v1218 = vld [vmem:[%s3 + $0x10] sm:$0xff]
        %v1219 = vld [vmem:[%s3 + $0x18] sm:$0xff]
        %v1220 = vld [vmem:[%s3 + $0x20] sm:$0xf]
        %vm1221 = vcmask 293888
        %v1223 = vsel %vm1221, %v1200, 0
        %v1226 = vsel %vm1221, %v1201, 0
        %v1229 = vsel %vm1221, %v1202, 0
        %v1232 = vsel %vm1221, %v1203, 0
        %v1235 = vsel %vm1221, %v1204, 0
        %v1238 = vsel %vm1221, %v1205, 0
        %v1241 = vsel %vm1221, %v1206, 0
        %v1244 = vsel %vm1221, %v1207, 0
        %v1247 = vsel %vm1221, %v1208, 0
        %v1250 = vsel %vm1221, %v1209, 0
        %v1253 = vsel %vm1221, %v1210, 0
        %v1256 = vsel %vm1221, %v1211, 0
        %v1259 = vsel %vm1221, %v1212, 0
        %v1262 = vsel %vm1221, %v1213, 0
        %v1265 = vsel %vm1221, %v1214, 0
        %v1268 = vsel %vm1221, %v1215, 0
        %vm1270 = vcmask 1043456
        %v1272 = vsel %vm1270, %v1220, 0
        %1274 = vmatprep.subr.mxu0 0.0
        %1275 = vmatpush1.msra.mxu0 %v1216
        %1276 = vmatprep.subr.mxu0 0.0
        %1277 = vmatpush1.msra.mxu0 %v1217
        %1278 = vmatprep.subr.mxu0 0.0
        %1279 = vmatpush1.msra.mxu0 %v1218
        %1280 = vmatprep.subr.mxu0 0.0
        %1281 = vmatpush1.msra.mxu0 %v1219
        %1282 = vmatprep.subr.mxu0 0.0
        %1283 = vmatpush1.msra.mxu0 %v1272
        %1284 = vmatprep.subr.mxu0 0.0
        %1285 = vmatpush1.msra.mxu0 0.0
        %1286 = vmatprep.subr.mxu0 0.0
        %1287 = vmatpush1.msra.mxu0 0.0
        %1288 = vmatprep.subr.mxu0 0.0
        %1289 = vmatpush1.msra.mxu0 0.0
        %1290 = vmatprep.subr.mxu0 0.0
        %1291 = vmatpush1.msra.mxu0 0.0
        %1292 = vmatprep.subr.mxu0 0.0
        %1293 = vmatpush1.msra.mxu0 0.0
        %1294 = vmatprep.subr.mxu0 0.0
        %1295 = vmatpush1.msra.mxu0 0.0
        %1296 = vmatprep.subr.mxu0 0.0
        %1297 = vmatpush1.msra.mxu0 0.0
        %1298 = vmatprep.subr.mxu0 0.0
        %1299 = vmatpush1.msra.mxu0 0.0
        %1300 = vmatprep.subr.mxu0 0.0
        %1301 = vmatpush1.msra.mxu0 0.0
        %1302 = vmatprep.subr.mxu0 0.0
        %1303 = vmatpush1.msra.mxu0 0.0
        %1304 = vmatprep.subr.mxu0 0.0
        %1305 = vmatpush1.msra.mxu0 0.0
        %1306 = vmatprep.subr.mxu0 0.0
        %1307 = vmatpush1.msra.mxu0 0.0
        %1308 = vmatprep.subr.mxu0 0.0
        %1309 = vmatpush1.msra.mxu0 0.0
        %1310 = vmatprep.subr.mxu0 0.0
        %1311 = vmatpush1.msra.mxu0 0.0
        %1312 = vmatprep.subr.mxu0 0.0
        %1313 = vmatpush1.msra.mxu0 0.0
        %1314 = vmatprep.subr.mxu0 0.0
        %1315 = vmatpush1.msra.mxu0 0.0
        %1316 = vmatprep.subr.mxu0 0.0
        %1317 = vmatpush1.msra.mxu0 0.0
        %1318 = vmatprep.subr.mxu0 0.0
        %1319 = vmatpush1.msra.mxu0 0.0
        %1320 = vmatprep.subr.mxu0 0.0
        %1321 = vmatpush1.msra.mxu0 0.0
        %1322 = vmatprep.subr.mxu0 0.0
        %1323 = vmatpush1.msra.mxu0 0.0
        %1324 = vmatprep.subr.mxu0 0.0
        %1325 = vmatpush1.msra.mxu0 0.0
        %1326 = vmatprep.subr.mxu0 0.0
        %1327 = vmatpush1.msra.mxu0 0.0
        %1328 = vmatprep.subr.mxu0 0.0
        %1329 = vmatpush1.msra.mxu0 0.0
        %1330 = vmatprep.subr.mxu0 0.0
        %1331 = vmatpush1.msra.mxu0 0.0
        %1332 = vmatprep.subr.mxu0 0.0
        %1333 = vmatpush1.msra.mxu0 0.0
        %1334 = vmatprep.subr.mxu0 0.0
        %1335 = vmatpush1.msra.mxu0 0.0
        %1336 = vmatprep.subr.mxu0 0.0
        %1337 = vmatpush1.msra.mxu0 0.0
        %1338 = vmatprep.mubr.f32.mxu0 0.0
        %1339 = vmatmul.mubr.f32.gmra.mrb[0].mxu0 %v1223
        %v1340 = vpop.f32.mrb[0].mxu0
        %v1341 = vadd.f32 0.0, %v1340
        %v1342 = vpop.f32.mrb[0].mxu0
        %1343 = vmatprep.mubr.f32.mxu0 0.0
        %1344 = vmatmul.mubr.f32.gmra.mrb[0].mxu0 %v1226
        %v1345 = vpop.f32.mrb[0].mxu0
        %v1346 = vadd.f32 0.0, %v1345
        %v1347 = vpop.f32.mrb[0].mxu0
        %1348 = vmatprep.mubr.f32.mxu0 0.0
        %1349 = vmatmul.mubr.f32.gmra.mrb[0].mxu0 %v1229
        %v1350 = vpop.f32.mrb[0].mxu0
        %v1351 = vadd.f32 0.0, %v1350
        %v1352 = vpop.f32.mrb[0].mxu0
        %1353 = vmatprep.mubr.f32.mxu0 0.0
        %1354 = vmatmul.mubr.f32.gmra.mrb[0].mxu0 %v1232
        %v1355 = vpop.f32.mrb[0].mxu0
        %v1356 = vadd.f32 0.0, %v1355
        %v1357 = vpop.f32.mrb[0].mxu0
        %1358 = vmatprep.mubr.f32.mxu0 0.0
        %1359 = vmatmul.mubr.f32.gmra.mrb[0].mxu0 %v1235
        %v1360 = vpop.f32.mrb[0].mxu0
        %v1361 = vadd.f32 0.0, %v1360
        %v1362 = vpop.f32.mrb[0].mxu0
        %1363 = vmatprep.mubr.f32.mxu0 0.0
        %1364 = vmatmul.mubr.f32.gmra.mrb[0].mxu0 %v1238
        %v1365 = vpop.f32.mrb[0].mxu0
        %v1366 = vadd.f32 0.0, %v1365
        %v1367 = vpop.f32.mrb[0].mxu0
        %1368 = vmatprep.mubr.f32.mxu0 0.0
        %1369 = vmatmul.mubr.f32.gmra.mrb[0].mxu0 %v1241
        %v1370 = vpop.f32.mrb[0].mxu0
        %v1371 = vadd.f32 0.0, %v1370
        %v1372 = vpop.f32.mrb[0].mxu0
        %1373 = vmatprep.mubr.f32.mxu0 0.0
        %1374 = vmatmul.mubr.f32.gmra.mrb[0].mxu0 %v1244
        %v1375 = vpop.f32.mrb[0].mxu0
        %v1376 = vadd.f32 0.0, %v1375
        %v1377 = vpop.f32.mrb[0].mxu0
        %1378 = vmatprep.mubr.f32.mxu0 0.0
        %1379 = vmatmul.mubr.f32.gmra.mrb[0].mxu0 %v1247
        %v1380 = vpop.f32.mrb[0].mxu0
        %v1381 = vadd.f32 0.0, %v1380
        %v1382 = vpop.f32.mrb[0].mxu0
        %1383 = vmatprep.mubr.f32.mxu0 0.0
        %1384 = vmatmul.mubr.f32.gmra.mrb[0].mxu0 %v1250
        %v1385 = vpop.f32.mrb[0].mxu0
        %v1386 = vadd.f32 0.0, %v1385
        %v1387 = vpop.f32.mrb[0].mxu0
        %1388 = vmatprep.mubr.f32.mxu0 0.0
        %1389 = vmatmul.mubr.f32.gmra.mrb[0].mxu0 %v1253
        %v1390 = vpop.f32.mrb[0].mxu0
        %v1391 = vadd.f32 0.0, %v1390
        %v1392 = vpop.f32.mrb[0].mxu0
        %1393 = vmatprep.mubr.f32.mxu0 0.0
        %1394 = vmatmul.mubr.f32.gmra.mrb[0].mxu0 %v1256
        %v1395 = vpop.f32.mrb[0].mxu0
        %v1396 = vadd.f32 0.0, %v1395
        %v1397 = vpop.f32.mrb[0].mxu0
        %1398 = vmatprep.mubr.f32.mxu0 0.0
        %1399 = vmatmul.mubr.f32.gmra.mrb[0].mxu0 %v1259
        %v1400 = vpop.f32.mrb[0].mxu0
        %v1401 = vadd.f32 0.0, %v1400
        %v1402 = vpop.f32.mrb[0].mxu0
        %1403 = vmatprep.mubr.f32.mxu0 0.0
        %1404 = vmatmul.mubr.f32.gmra.mrb[0].mxu0 %v1262
        %v1405 = vpop.f32.mrb[0].mxu0
        %v1406 = vadd.f32 0.0, %v1405
        %v1407 = vpop.f32.mrb[0].mxu0
        %1408 = vmatprep.mubr.f32.mxu0 0.0
        %1409 = vmatmul.mubr.f32.gmra.mrb[0].mxu0 %v1265
        %v1410 = vpop.f32.mrb[0].mxu0
        %v1411 = vadd.f32 0.0, %v1410
        %v1412 = vpop.f32.mrb[0].mxu0
        %1413 = vmatprep.mubr.f32.mxu0 0.0
        %1414 = vmatmul.mubr.f32.gmra.mrb[0].mxu0 %v1268
        %v1415 = vpop.f32.mrb[0].mxu0
        %v1416 = vadd.f32 0.0, %v1415
        %v1417 = vpop.f32.mrb[0].mxu0
        %1418 = vdwg.mxu0
        %1419 = vst [vmem:[%s333] sm:$0xff] %v1341
        %1420 = vst [vmem:[%s333 + $0x8] sm:$0xff] %v1346
        %1421 = vst [vmem:[%s333 + $0x10] sm:$0xff] %v1351
        %1422 = vst [vmem:[%s333 + $0x18] sm:$0xff] %v1356
        %1423 = vst [vmem:[%s333 + $0x20] sm:$0xff] %v1361
        %1424 = vst [vmem:[%s333 + $0x28] sm:$0xff] %v1366
        %1425 = vst [vmem:[%s333 + $0x30] sm:$0xff] %v1371
        %1426 = vst [vmem:[%s333 + $0x38] sm:$0xff] %v1376
        %1427 = vst [vmem:[%s333 + $0x40] sm:$0xff] %v1381
        %1428 = vst [vmem:[%s333 + $0x48] sm:$0xff] %v1386
        %1429 = vst [vmem:[%s333 + $0x50] sm:$0xff] %v1391
        %1430 = vst [vmem:[%s333 + $0x58] sm:$0xff] %v1396
        %1431 = vst [vmem:[%s333 + $0x60] sm:$0xff] %v1401
        %1432 = vst [vmem:[%s333 + $0x68] sm:$0xff] %v1406
        %1433 = vst [vmem:[%s333 + $0x70] sm:$0xff] %v1411
        %1434 = vst [vmem:[%s333 + $0x78] sm:$0xff] %v1416
        %p1435 = scmp.eq.s32.totalorder %s28, 0
        // Predicated region
        $region37: #{tpu_custom_call.1} parent=35 // pred_check
          %p1436 = pneg %p1435
        $region38: #{tpu_custom_call.1} parent=35 // pred_check_branch
          %1438 = sbr.rel (%p1436) target = $region40
        $region39: #{tpu_custom_call.1} parent=35 // pred_region
          %1439 = vst [vmem:[%s340] sm:$0x3] 0.0
        $region40: #{tpu_custom_call.1} parent=35 // pred_fallthru
          _
        %v1440 = vld [vmem:[%s340] sm:$0x1]
        %v1441 = vadd.f32 %v1341, %v1346
        %v1442 = vadd.f32 %v1441, %v1351
        %v1443 = vadd.f32 %v1442, %v1356
        %v1444 = vadd.f32 %v1443, %v1361
        %v1445 = vadd.f32 %v1444, %v1366
        %v1446 = vadd.f32 %v1445, %v1371
        %v1447 = vadd.f32 %v1446, %v1376
        %v1448 = vadd.f32 %v1447, %v1381
        %v1449 = vadd.f32 %v1448, %v1386
        %v1450 = vadd.f32 %v1449, %v1391
        %v1451 = vadd.f32 %v1450, %v1396
        %v1452 = vadd.f32 %v1451, %v1401
        %v1453 = vadd.f32 %v1452, %v1406
        %v1454 = vadd.f32 %v1453, %v1411
        %v1455 = vadd.f32 %v1454, %v1416
        %v1456 = vrot.slane %v1455, 4
        %v1457 = vadd.f32 %v1455, %v1456
        %v1458 = vrot.slane %v1457, 2
        %v1459 = vadd.f32 %v1457, %v1458
        %v1460 = vrot.slane %v1459, 1
        %v1461 = vadd.f32 %v1459, %v1460
        %v1462 = vadd.f32 %v1440, %v1461
        %1463 = vst [vmem:[%s340] sm:$0x1] %v1462
        %v1464 = vld [vmem:[%s340 + $0x1] sm:$0x1]
        %v1465 = vmul.f32 %v1341, %v1341
        %v1466 = vmul.f32 %v1346, %v1346
        %v1467 = vmul.f32 %v1351, %v1351
        %v1468 = vmul.f32 %v1356, %v1356
        %v1469 = vmul.f32 %v1361, %v1361
        %v1470 = vmul.f32 %v1366, %v1366
        %v1471 = vmul.f32 %v1371, %v1371
        %v1472 = vmul.f32 %v1376, %v1376
        %v1473 = vmul.f32 %v1381, %v1381
        %v1474 = vmul.f32 %v1386, %v1386
        %v1475 = vmul.f32 %v1391, %v1391
        %v1476 = vmul.f32 %v1396, %v1396
        %v1477 = vmul.f32 %v1401, %v1401
        %v1478 = vmul.f32 %v1406, %v1406
        %v1479 = vmul.f32 %v1411, %v1411
        %v1480 = vmul.f32 %v1416, %v1416
        %v1481 = vadd.f32 %v1465, %v1466
        %v1482 = vadd.f32 %v1481, %v1467
        %v1483 = vadd.f32 %v1482, %v1468
        %v1484 = vadd.f32 %v1483, %v1469
        %v1485 = vadd.f32 %v1484, %v1470
        %v1486 = vadd.f32 %v1485, %v1471
        %v1487 = vadd.f32 %v1486, %v1472
        %v1488 = vadd.f32 %v1487, %v1473
        %v1489 = vadd.f32 %v1488, %v1474
        %v1490 = vadd.f32 %v1489, %v1475
        %v1491 = vadd.f32 %v1490, %v1476
        %v1492 = vadd.f32 %v1491, %v1477
        %v1493 = vadd.f32 %v1492, %v1478
        %v1494 = vadd.f32 %v1493, %v1479
        %v1495 = vadd.f32 %v1494, %v1480
        %v1496 = vrot.slane %v1495, 4
        %v1497 = vadd.f32 %v1495, %v1496
        %v1498 = vrot.slane %v1497, 2
        %v1499 = vadd.f32 %v1497, %v1498
        %v1500 = vrot.slane %v1499, 1
        %v1501 = vadd.f32 %v1499, %v1500
        %v1502 = vadd.f32 %v1464, %v1501
        %1503 = vst [vmem:[%s340 + $0x1] sm:$0x1] %v1502
        %s1504 = sand.u32 %s158, 1
        %s1505 = scalar_lea.sflag [#allocation4], %s1504
        %s1506 = sand.u32 %s158, 1
        %s1507 = smul.addr %s1506, 128
        %s1508 = scalar_lea.vmem [#allocation3], %s1507
        %s1509 = sand.u32 %s184, 1
        %s1510 = scalar_lea.sflag [#allocation6], %s1509
        %s1511 = sand.u32 %s184, 1
        %s1512 = smul.addr %s1511, 2
        %s1513 = scalar_lea.vmem [#allocation5], %s1512
        // Predicated region
        $region41: #{tpu_custom_call.1} parent=35 // pred_check
          %p1514 = pneg %p168
        $region42: #{tpu_custom_call.1} parent=35 // pred_check_branch
          %1516 = sbr.rel (%p1514) target = $region44
        $region43: #{tpu_custom_call.1} parent=35 // pred_region
          %s1517 = smul.u32 16, %s28
          %s1519 = ssub.s32 2048, 2048
          %1520 = vsyncadd %s1505, %s1519
          %s1521 = smul.addr %s27, 32
          %s1522 = sadd.s32 %s1517, %s1521
          %s1523 = smul.addr %s1522, 128
          %s1524 = scalar_lea.hbm %s4, %s1523
          %s1525 = sshll.u32 %s1508, 4
          %s1526 = int_to_ptr.vmem [resolvable:$true] %s1525
          %1531 = dma.vmem_to_hbm [thread:$0]  %s1526, 2048, %s1524, %s1505, 128, 128, 8
        $region44: #{tpu_custom_call.1} parent=35 // pred_fallthru
          _
        // Predicated region
        $region45: #{tpu_custom_call.1} parent=35 // pred_check
          %p1532 = pneg %p194
        $region46: #{tpu_custom_call.1} parent=35 // pred_check_branch
          %1534 = sbr.rel (%p1532) target = $region48
        $region47: #{tpu_custom_call.1} parent=35 // pred_region
          %s1536 = ssub.s32 32, 32
          %1537 = vsyncadd %s1510, %s1536
          %s1538 = smul.addr %s27, 32
          %s1539 = scalar_lea.hbm %s5, %s1538
          %s1541 = sshll.u32 %s1513, 4
          %s1542 = int_to_ptr.vmem [resolvable:$true] %s1541
          %1544 = dma.vmem_to_hbm [thread:$0]  %s1542, 32, %s1539, %s1510
        $region48: #{tpu_custom_call.1} parent=35 // pred_fallthru
          _
      $region36: #{tpu_custom_call.1} parent=5 // pred_fallthru
        _
      %p1545 = scmp.le.s32.totalorder 2, %s18
      // Predicated region
      $region49: #{tpu_custom_call.1} parent=5 // pred_check
        %p1546 = pneg %p1545
      $region50: #{tpu_custom_call.1} parent=5 // pred_check_branch
        %1548 = sbr.rel (%p1546) target = $region52
      $region51: #{tpu_custom_call.1} parent=5 // pred_region
        %s1549 = ssub.s32 %s18, 2
        // Predicated region
        $region53: #{tpu_custom_call.1} parent=51 // pred_check
          %p1550 = pneg %p174
        $region54: #{tpu_custom_call.1} parent=51 // pred_check_branch
          %1552 = sbr.rel (%p1550) target = $region56
        $region55: #{tpu_custom_call.1} parent=51 // pred_region
          %s1553 = sand.u32 %s159, 1
          %s1554 = scalar_lea.sflag [#allocation4], %s1553
          %s1555 = sand.u32 %s159, 1
          %s1556 = smul.addr %s1555, 128
          %s1557 = scalar_lea.vmem [#allocation3], %s1556
          %1558 = dma.done %s1554, 2048
        $region56: #{tpu_custom_call.1} parent=51 // pred_fallthru
          _
        // Predicated region
        $region57: #{tpu_custom_call.1} parent=51 // pred_check
          %p1559 = pneg %p200
        $region58: #{tpu_custom_call.1} parent=51 // pred_check_branch
          %1561 = sbr.rel (%p1559) target = $region60
        $region59: #{tpu_custom_call.1} parent=51 // pred_region
          %s1562 = sand.u32 %s185, 1
          %s1563 = scalar_lea.sflag [#allocation6], %s1562
          %s1564 = sand.u32 %s185, 1
          %s1565 = smul.addr %s1564, 2
          %s1566 = scalar_lea.vmem [#allocation5], %s1565
          %1567 = dma.done %s1563, 32
        $region60: #{tpu_custom_call.1} parent=51 // pred_fallthru
          _
      $region52: #{tpu_custom_call.1} parent=5 // pred_fallthru
        _
    $region6: #{tpu_custom_call.1} parent=1 // loop_footer
      %s22 = sadd.s32 1, %s18
    $region7: #{tpu_custom_call.1} parent=1 // loop_footer_branch
      %17 = sbr.rel target = $region3
    $region8: #{tpu_custom_call.1} parent=1 // loop_exit
      _
    %1568 = vsyncpa [#allocation4], 1
    %s1569 = scalar_lea.sflag [#allocation4], 1
    %1570 = vsyncpa %s1569, 1
    %1571 = vsyncpa [#allocation6], 1
    %s1572 = scalar_lea.sflag [#allocation6], 1
    %1573 = vsyncpa %s1572, 1

</llo_original>
